<compile_context>
chip_gen: v7x
topology: tpu7x:2x2x1
jax: 0.10.0
libtpu: 0.0.40
codegen_flags: <defaults>
</compile_context>

<pallas_src>
import jax
import jax.numpy as jnp
from jax.experimental import pallas as pl
from jax.experimental.pallas import tpu as pltpu

# --- synthetic "BertConfig" (small shapes; checkpoint/vocab loading is out of scope) ---
SEQ = 8
HIDDEN = 32
HEADS = 2
HEAD_DIM = HIDDEN // HEADS
INTER = 64
LAYERS = 2
VOCAB = 64
MAX_POS = 16

# per-layer "vecs" slab row indices (last dim padded to MAXW = max(3*HIDDEN, INTER))
MAXW = max(3 * HIDDEN, INTER)
V_BQKV, V_BO, V_LN1G, V_LN1B, V_B1, V_B2, V_LN2G, V_LN2B = range(8)


def _layernorm(x, gamma, beta, eps=1e-12):
    mu = jnp.mean(x, axis=-1, keepdims=True)
    var = jnp.mean((x - mu) ** 2, axis=-1, keepdims=True)
    return (x - mu) * jax.lax.rsqrt(var + eps) * gamma + beta


# -------------------- Pallas kernel: fused Similar.forward --------------------
def similar_fused_kernel(ids_ref, spans_ref, word_emb_ref, emb_misc_ref,
                         wqkv_ref, wo_ref, w1_ref, w2_ref, vecs_ref, out_ref):
    S = ids_ref.shape[0]
    V = word_emb_ref.shape[0]
    MP = emb_misc_ref.shape[0] - 3          # rows: [0:MP] pos+type, MP ln_g, MP+1 ln_b, MP+2 mask

    # ---- embeddings: one-hot @ table on the MXU (no gather), + (pos+type), LN ----
    ids = ids_ref[...]                                                   # (S, 1) int32
    onehot = (jax.lax.broadcasted_iota(jnp.int32, (S, V), 1) == ids).astype(jnp.float32)
    emb = jnp.dot(onehot, word_emb_ref[...], preferred_element_type=jnp.float32)

    em = emb_misc_ref[...]                                               # (MP+3, HIDDEN)
    emb = emb + em[:S, :]                                                # pos_emb[:S] + type_emb[0]
    x = _layernorm(emb, em[MP:MP + 1, :], em[MP + 1:MP + 2, :])

    # additive attention mask, precomputed in the wrapper and carried in emb_misc
    add_mask = em[MP + 2:MP + 3, :S]                                     # (1, S), 0 / -1e9

    scale = 1.0 / (HEAD_DIM ** 0.5)
    for l in range(LAYERS):                 # static unroll, all layer weights VMEM-resident
        vl = vecs_ref[l]                                                 # (8, MAXW) bias/LN slab

        # --- attention: one fused QKV projection per layer ---
        qkv = jnp.dot(x, wqkv_ref[l], preferred_element_type=jnp.float32) \
            + vl[V_BQKV:V_BQKV + 1, :3 * HIDDEN]                         # (S, 3H)

        ctxs = []
        for h in range(HEADS):              # static lane slices, no per-head matmuls for Q/K/V
            lo = h * HEAD_DIM
            qh = qkv[:, lo:lo + HEAD_DIM]
            kh = qkv[:, HIDDEN + lo:HIDDEN + lo + HEAD_DIM]
            vh = qkv[:, 2 * HIDDEN + lo:2 * HIDDEN + lo + HEAD_DIM]
            s = jnp.dot(qh, kh.T, preferred_element_type=jnp.float32) * scale + add_mask
            s = s - jnp.max(s, axis=-1, keepdims=True)
            e = jnp.exp(s)
            p = e * pl.reciprocal(jnp.sum(e, axis=-1, keepdims=True), approx=True)
            ctxs.append(jnp.dot(p, vh, preferred_element_type=jnp.float32))   # (S, HEAD_DIM)

        ctx = jnp.concatenate(ctxs, axis=-1)                             # (S, H)
        attn = jnp.dot(ctx, wo_ref[l], preferred_element_type=jnp.float32) \
            + vl[V_BO:V_BO + 1, :HIDDEN]
        x1 = _layernorm(x + attn, vl[V_LN1G:V_LN1G + 1, :HIDDEN], vl[V_LN1B:V_LN1B + 1, :HIDDEN])

        # --- feed-forward ---
        hdn = jnp.dot(x1, w1_ref[l], preferred_element_type=jnp.float32) \
            + vl[V_B1:V_B1 + 1, :INTER]
        # TODO(synk): HF/PyTorch BERT default GELU is the exact erf form; tanh approx used here.
        hdn = jax.nn.gelu(hdn, approximate=True)
        ffn = jnp.dot(hdn, w2_ref[l], preferred_element_type=jnp.float32) \
            + vl[V_B2:V_B2 + 1, :HIDDEN]
        x = _layernorm(x1 + ffn, vl[V_LN2G:V_LN2G + 1, :HIDDEN], vl[V_LN2B:V_LN2B + 1, :HIDDEN])

    # ---- span mean pooling: one (P,S)x(S,H) MXU matmul + exact divide ----
    spans = spans_ref[...]                                               # (P, 2) int32
    starts = spans[:, 0:1]
    ends = spans[:, 1:2]
    P = spans.shape[0]
    pos = jax.lax.broadcasted_iota(jnp.int32, (P, S), 1)
    m = jnp.logical_and(pos >= starts, pos < ends).astype(jnp.float32)   # (P, S)
    sums = jnp.dot(m, x, preferred_element_type=jnp.float32)             # (P, H)
    # exact divide: a zero-length span gives 0/0 = NaN, matching torch's empty-slice mean
    out_ref[...] = sums / (ends - starts).astype(jnp.float32)


# -------------------- wrapper (single pallas_call, no grid) --------------------
@jax.jit
def _forward_jit(params, ids_col, amask, spans):
    S = ids_col.shape[0]
    P = spans.shape[0]

    # Fold the runtime additive attention mask into the emb_misc slab (one fewer DMA).
    mask_row = (1.0 - amask.astype(jnp.float32)) * -1e9                  # (1, S)
    mask_row = jnp.pad(mask_row, ((0, 0), (0, HIDDEN - S)))
    emb_misc = jnp.concatenate([params['emb_misc'], mask_row], axis=0)   # (MAX_POS+3, H)

    vmem = pl.BlockSpec(memory_space=pltpu.MemorySpace.VMEM)
    args = (ids_col, spans, params['word_emb'], emb_misc,
            params['wqkv'], params['wo'], params['w1'], params['w2'], params['vecs'])
    return pl.pallas_call(
        similar_fused_kernel,
        out_shape=jax.ShapeDtypeStruct((P, HIDDEN), jnp.float32),
        in_specs=[vmem] * len(args),
        out_specs=vmem,
    )(*args)


def similar_forward(params, input_ids, attention_mask, start_end_pos):
    assert input_ids.shape[0] == 1, "Similar.forward requires batch size 1"
    S = input_ids.shape[1]
    assert S <= MAX_POS and S <= HIDDEN
    ids_col = input_ids[0].astype(jnp.int32)[:, None]                    # (S, 1)
    amask = attention_mask[:1].astype(jnp.int32)                         # (1, S)
    spans = jnp.array(start_end_pos, dtype=jnp.int32)                    # (P, 2)
    # Returns (P, H); row i corresponds to sent_hidden[i] of the PyTorch module.
    return _forward_jit(params, ids_col, amask, spans)


# -------------------- parameter init (deterministic, synthetic) --------------------
def init_params(key):
    keys = iter(jax.random.split(key, 3 + LAYERS * 6))

    def dense(shape):
        return 0.02 * jax.random.normal(next(keys), shape, jnp.float32)

    def row(v):                               # pad a 1-D vector into one (1, MAXW) slab row
        v = jnp.asarray(v, jnp.float32).reshape(1, -1)
        return jnp.pad(v, ((0, 0), (0, MAXW - v.shape[1])))

    word_emb = dense((VOCAB, HIDDEN))
    pos_emb = dense((MAX_POS, HIDDEN))
    type_emb = dense((2, HIDDEN))
    # TODO(synk): token_type_ids assumed all-zero (only type_emb row 0 is ever added).
    emb_misc = jnp.concatenate(
        [pos_emb + type_emb[0:1],
         jnp.ones((1, HIDDEN), jnp.float32),       # embedding LayerNorm gamma
         jnp.zeros((1, HIDDEN), jnp.float32)],     # embedding LayerNorm beta
        axis=0)                                     # (MAX_POS + 2, HIDDEN)

    wqkv, wo, w1, w2, vecs = [], [], [], [], []
    for _ in range(LAYERS):
        wq, wk, wv = dense((HIDDEN, HIDDEN)), dense((HIDDEN, HIDDEN)), dense((HIDDEN, HIDDEN))
        wqkv.append(jnp.concatenate([wq, wk, wv], axis=1))               # (H, 3H) fused QKV
        wo.append(dense((HIDDEN, HIDDEN)))
        w1.append(dense((HIDDEN, INTER)))
        w2.append(dense((INTER, HIDDEN)))
        vecs.append(jnp.concatenate(
            [row(jnp.zeros((3 * HIDDEN,), jnp.float32)),   # V_BQKV
             row(jnp.zeros((HIDDEN,), jnp.float32)),       # V_BO
             row(jnp.ones((HIDDEN,), jnp.float32)),        # V_LN1G
             row(jnp.zeros((HIDDEN,), jnp.float32)),       # V_LN1B
             row(jnp.zeros((INTER,), jnp.float32)),        # V_B1
             row(jnp.zeros((HIDDEN,), jnp.float32)),       # V_B2
             row(jnp.ones((HIDDEN,), jnp.float32)),        # V_LN2G
             row(jnp.zeros((HIDDEN,), jnp.float32))],      # V_LN2B
            axis=0))                                        # (8, MAXW)

    return {
        'word_emb': word_emb,
        'emb_misc': emb_misc,
        'wqkv': jnp.stack(wqkv),      # (L, H, 3H)
        'wo': jnp.stack(wo),          # (L, H, H)
        'w1': jnp.stack(w1),          # (L, H, INTER)
        'w2': jnp.stack(w2),          # (L, INTER, H)
        'vecs': jnp.stack(vecs),      # (L, 8, MAXW) biases + LayerNorm params
    }


# TODO(synk): vocab-file / pretrained state-dict loading in __init__ has no kernel
# equivalent; weights are synthetic and deterministic instead.

if __name__ == "__main__":
    root = jax.random.PRNGKey(0)
    k_params, k_ids = jax.random.split(root)

    params = init_params(k_params)

    input_ids = jax.random.randint(k_ids, (1, SEQ), 5, VOCAB, dtype=jnp.int32)
    attention_mask = jnp.array([[1, 1, 1, 1, 1, 1, 1, 0]], dtype=jnp.int32)
    start_end_pos = [(0, 3), (3, 5), (5, 8)]

    pooled = similar_forward(params, input_ids, attention_mask, start_end_pos)
    pooled = jax.block_until_ready(pooled)

    assert pooled.shape == (len(start_end_pos), HIDDEN)
    assert bool(jnp.all(jnp.isfinite(pooled)))
    print("KERNEL_OK")
</pallas_src>

<mosaic_0001>
module attributes {stable_mosaic.version = 11 : i64} {
  func.func @similar_fused_kernel(%arg0: memref<8x1xi32, #tpu.memory_space<vmem>>, %arg1: memref<3x2xi32, #tpu.memory_space<vmem>>, %arg2: memref<64x32xf32, #tpu.memory_space<vmem>>, %arg3: memref<19x32xf32, #tpu.memory_space<vmem>>, %arg4: memref<2x32x96xf32, #tpu.memory_space<vmem>>, %arg5: memref<2x32x32xf32, #tpu.memory_space<vmem>>, %arg6: memref<2x32x64xf32, #tpu.memory_space<vmem>>, %arg7: memref<2x64x32xf32, #tpu.memory_space<vmem>>, %arg8: memref<2x8x96xf32, #tpu.memory_space<vmem>>, %arg9: memref<3x32xf32, #tpu.memory_space<vmem>>) attributes {dimension_semantics = [], scalar_prefetch = 0 : i64, scratch_operands = 0 : i64, tpu.core_type = #tpu.core_type<tc>} {
    %c0 = arith.constant 0 : index
    %c0_0 = arith.constant 0 : index
    %0 = vector.load %arg0[%c0, %c0_0] : memref<8x1xi32, #tpu.memory_space<vmem>>, vector<8x1xi32>
    %1 = tpu.iota {dimensions = array<i32: 1>} : vector<8x64xi32>
    %2 = vector.broadcast %0 : vector<8x1xi32> to vector<8x64xi32>
    %3 = arith.cmpi eq, %1, %2 : vector<8x64xi32>
    %4 = arith.extui %3 : vector<8x64xi1> to vector<8x64xi32>
    %5 = arith.sitofp %4 : vector<8x64xi32> to vector<8x64xf32>
    %c0_1 = arith.constant 0 : index
    %c0_2 = arith.constant 0 : index
    %6 = vector.load %arg2[%c0_1, %c0_2] : memref<64x32xf32, #tpu.memory_space<vmem>>, vector<64x32xf32>
    %cst = arith.constant dense<0.000000e+00> : vector<8x32xf32>
    %7 = tpu.matmul %5, %6, %cst {dimension_numbers = #tpu.dot_dimension_numbers<[1], [0], [0], [1], [0, 0, 1, 1], [], []>} : vector<8x64xf32>, vector<64x32xf32>, vector<8x32xf32> -> vector<8x32xf32>
    %c0_3 = arith.constant 0 : index
    %c0_4 = arith.constant 0 : index
    %8 = vector.load %arg3[%c0_3, %c0_4] : memref<19x32xf32, #tpu.memory_space<vmem>>, vector<19x32xf32>
    %9 = vector.extract_strided_slice %8 {offsets = [0, 0], sizes = [8, 32], strides = [1, 1]} : vector<19x32xf32> to vector<8x32xf32>
    %10 = arith.addf %7, %9 : vector<8x32xf32>
    %11 = vector.extract_strided_slice %8 {offsets = [16, 0], sizes = [1, 32], strides = [1, 1]} : vector<19x32xf32> to vector<1x32xf32>
    %12 = vector.extract_strided_slice %8 {offsets = [17, 0], sizes = [1, 32], strides = [1, 1]} : vector<19x32xf32> to vector<1x32xf32>
    %cst_5 = arith.constant dense<0.000000e+00> : vector<8xf32>
    %13 = vector.multi_reduction <add>, %10, %cst_5 [1] : vector<8x32xf32> to vector<8xf32>
    %14 = vector.shape_cast %13 : vector<8xf32> to vector<8x1xf32>
    %cst_6 = arith.constant 3.200000e+01 : f32
    %15 = vector.broadcast %cst_6 : f32 to vector<8x1xf32>
    %16 = arith.divf %14, %15 : vector<8x1xf32>
    %17 = vector.broadcast %16 : vector<8x1xf32> to vector<8x32xf32>
    %18 = arith.subf %10, %17 : vector<8x32xf32>
    %19 = arith.mulf %18, %18 : vector<8x32xf32>
    %cst_7 = arith.constant dense<0.000000e+00> : vector<8xf32>
    %20 = vector.multi_reduction <add>, %19, %cst_7 [1] : vector<8x32xf32> to vector<8xf32>
    %21 = vector.shape_cast %20 : vector<8xf32> to vector<8x1xf32>
    %cst_8 = arith.constant 3.200000e+01 : f32
    %22 = vector.broadcast %cst_8 : f32 to vector<8x1xf32>
    %23 = arith.divf %21, %22 : vector<8x1xf32>
    %24 = vector.broadcast %16 : vector<8x1xf32> to vector<8x32xf32>
    %25 = arith.subf %10, %24 : vector<8x32xf32>
    %cst_9 = arith.constant 9.99999996E-13 : f32
    %26 = vector.broadcast %cst_9 : f32 to vector<8x1xf32>
    %27 = arith.addf %23, %26 : vector<8x1xf32>
    %28 = math.rsqrt %27 : vector<8x1xf32>
    %29 = vector.broadcast %28 : vector<8x1xf32> to vector<8x32xf32>
    %30 = arith.mulf %25, %29 : vector<8x32xf32>
    %31 = vector.broadcast %11 : vector<1x32xf32> to vector<8x32xf32>
    %32 = arith.mulf %30, %31 : vector<8x32xf32>
    %33 = vector.broadcast %12 : vector<1x32xf32> to vector<8x32xf32>
    %34 = arith.addf %32, %33 : vector<8x32xf32>
    %35 = vector.extract_strided_slice %8 {offsets = [18, 0], sizes = [1, 8], strides = [1, 1]} : vector<19x32xf32> to vector<1x8xf32>
    %c0_10 = arith.constant 0 : index
    %c0_11 = arith.constant 0 : index
    %c0_12 = arith.constant 0 : index
    %36 = vector.load %arg8[%c0_10, %c0_11, %c0_12] : memref<2x8x96xf32, #tpu.memory_space<vmem>>, vector<1x8x96xf32>
    %37 = vector.shape_cast %36 : vector<1x8x96xf32> to vector<8x96xf32>
    %c0_13 = arith.constant 0 : index
    %c0_14 = arith.constant 0 : index
    %c0_15 = arith.constant 0 : index
    %38 = vector.load %arg4[%c0_13, %c0_14, %c0_15] : memref<2x32x96xf32, #tpu.memory_space<vmem>>, vector<1x32x96xf32>
    %39 = vector.shape_cast %38 : vector<1x32x96xf32> to vector<32x96xf32>
    %cst_16 = arith.constant dense<0.000000e+00> : vector<8x96xf32>
    %40 = tpu.matmul %34, %39, %cst_16 {dimension_numbers = #tpu.dot_dimension_numbers<[1], [0], [0], [1], [0, 0, 1, 1], [], []>} : vector<8x32xf32>, vector<32x96xf32>, vector<8x96xf32> -> vector<8x96xf32>
    %41 = vector.extract_strided_slice %37 {offsets = [0, 0], sizes = [1, 96], strides = [1, 1]} : vector<8x96xf32> to vector<1x96xf32>
    %42 = vector.broadcast %41 : vector<1x96xf32> to vector<8x96xf32>
    %43 = arith.addf %40, %42 : vector<8x96xf32>
    %44 = vector.extract_strided_slice %43 {offsets = [0, 0], sizes = [8, 16], strides = [1, 1]} : vector<8x96xf32> to vector<8x16xf32>
    %45 = vector.extract_strided_slice %43 {offsets = [0, 32], sizes = [8, 16], strides = [1, 1]} : vector<8x96xf32> to vector<8x16xf32>
    %46 = vector.extract_strided_slice %43 {offsets = [0, 64], sizes = [8, 16], strides = [1, 1]} : vector<8x96xf32> to vector<8x16xf32>
    %47 = tpu.transpose %45, [1, 0] : vector<8x16xf32> -> vector<16x8xf32>
    %cst_17 = arith.constant dense<0.000000e+00> : vector<8x8xf32>
    %48 = tpu.matmul %44, %47, %cst_17 {dimension_numbers = #tpu.dot_dimension_numbers<[1], [0], [0], [1], [0, 0, 1, 1], [], []>} : vector<8x16xf32>, vector<16x8xf32>, vector<8x8xf32> -> vector<8x8xf32>
    %cst_18 = arith.constant 2.500000e-01 : f32
    %49 = vector.broadcast %cst_18 : f32 to vector<8x8xf32>
    %50 = arith.mulf %48, %49 : vector<8x8xf32>
    %51 = vector.broadcast %35 : vector<1x8xf32> to vector<8x8xf32>
    %52 = arith.addf %50, %51 : vector<8x8xf32>
    %cst_19 = arith.constant dense<0xFF800000> : vector<8xf32>
    %53 = vector.multi_reduction <maximumf>, %52, %cst_19 [1] : vector<8x8xf32> to vector<8xf32>
    %54 = vector.shape_cast %53 : vector<8xf32> to vector<8x1xf32>
    %55 = vector.broadcast %54 : vector<8x1xf32> to vector<8x8xf32>
    %56 = arith.subf %52, %55 : vector<8x8xf32>
    %57 = math.exp %56 : vector<8x8xf32>
    %cst_20 = arith.constant dense<0.000000e+00> : vector<8xf32>
    %58 = vector.multi_reduction <add>, %57, %cst_20 [1] : vector<8x8xf32> to vector<8xf32>
    %59 = vector.shape_cast %58 : vector<8xf32> to vector<8x1xf32>
    %60 = tpu.reciprocal %59 {approx = true} : vector<8x1xf32> -> vector<8x1xf32>
    %61 = vector.broadcast %60 : vector<8x1xf32> to vector<8x8xf32>
    %62 = arith.mulf %57, %61 : vector<8x8xf32>
    %cst_21 = arith.constant dense<0.000000e+00> : vector<8x16xf32>
    %63 = tpu.matmul %62, %46, %cst_21 {dimension_numbers = #tpu.dot_dimension_numbers<[1], [0], [0], [1], [0, 0, 1, 1], [], []>} : vector<8x8xf32>, vector<8x16xf32>, vector<8x16xf32> -> vector<8x16xf32>
    %64 = vector.extract_strided_slice %43 {offsets = [0, 16], sizes = [8, 16], strides = [1, 1]} : vector<8x96xf32> to vector<8x16xf32>
    %65 = vector.extract_strided_slice %43 {offsets = [0, 48], sizes = [8, 16], strides = [1, 1]} : vector<8x96xf32> to vector<8x16xf32>
    %66 = vector.extract_strided_slice %43 {offsets = [0, 80], sizes = [8, 16], strides = [1, 1]} : vector<8x96xf32> to vector<8x16xf32>
    %67 = tpu.transpose %65, [1, 0] : vector<8x16xf32> -> vector<16x8xf32>
    %cst_22 = arith.constant dense<0.000000e+00> : vector<8x8xf32>
    %68 = tpu.matmul %64, %67, %cst_22 {dimension_numbers = #tpu.dot_dimension_numbers<[1], [0], [0], [1], [0, 0, 1, 1], [], []>} : vector<8x16xf32>, vector<16x8xf32>, vector<8x8xf32> -> vector<8x8xf32>
    %cst_23 = arith.constant 2.500000e-01 : f32
    %69 = vector.broadcast %cst_23 : f32 to vector<8x8xf32>
    %70 = arith.mulf %68, %69 : vector<8x8xf32>
    %71 = vector.broadcast %35 : vector<1x8xf32> to vector<8x8xf32>
    %72 = arith.addf %70, %71 : vector<8x8xf32>
    %cst_24 = arith.constant dense<0xFF800000> : vector<8xf32>
    %73 = vector.multi_reduction <maximumf>, %72, %cst_24 [1] : vector<8x8xf32> to vector<8xf32>
    %74 = vector.shape_cast %73 : vector<8xf32> to vector<8x1xf32>
    %75 = vector.broadcast %74 : vector<8x1xf32> to vector<8x8xf32>
    %76 = arith.subf %72, %75 : vector<8x8xf32>
    %77 = math.exp %76 : vector<8x8xf32>
    %cst_25 = arith.constant dense<0.000000e+00> : vector<8xf32>
    %78 = vector.multi_reduction <add>, %77, %cst_25 [1] : vector<8x8xf32> to vector<8xf32>
    %79 = vector.shape_cast %78 : vector<8xf32> to vector<8x1xf32>
    %80 = tpu.reciprocal %79 {approx = true} : vector<8x1xf32> -> vector<8x1xf32>
    %81 = vector.broadcast %80 : vector<8x1xf32> to vector<8x8xf32>
    %82 = arith.mulf %77, %81 : vector<8x8xf32>
    %cst_26 = arith.constant dense<0.000000e+00> : vector<8x16xf32>
    %83 = tpu.matmul %82, %66, %cst_26 {dimension_numbers = #tpu.dot_dimension_numbers<[1], [0], [0], [1], [0, 0, 1, 1], [], []>} : vector<8x8xf32>, vector<8x16xf32>, vector<8x16xf32> -> vector<8x16xf32>
    %84 = tpu.concatenate %63, %83 in 1 : vector<8x16xf32>, vector<8x16xf32> -> vector<8x32xf32>
    %c0_27 = arith.constant 0 : index
    %c0_28 = arith.constant 0 : index
    %c0_29 = arith.constant 0 : index
    %85 = vector.load %arg5[%c0_27, %c0_28, %c0_29] : memref<2x32x32xf32, #tpu.memory_space<vmem>>, vector<1x32x32xf32>
    %86 = vector.shape_cast %85 : vector<1x32x32xf32> to vector<32x32xf32>
    %cst_30 = arith.constant dense<0.000000e+00> : vector<8x32xf32>
    %87 = tpu.matmul %84, %86, %cst_30 {dimension_numbers = #tpu.dot_dimension_numbers<[1], [0], [0], [1], [0, 0, 1, 1], [], []>} : vector<8x32xf32>, vector<32x32xf32>, vector<8x32xf32> -> vector<8x32xf32>
    %88 = vector.extract_strided_slice %37 {offsets = [1, 0], sizes = [1, 32], strides = [1, 1]} : vector<8x96xf32> to vector<1x32xf32>
    %89 = vector.broadcast %88 : vector<1x32xf32> to vector<8x32xf32>
    %90 = arith.addf %87, %89 : vector<8x32xf32>
    %91 = arith.addf %34, %90 : vector<8x32xf32>
    %92 = vector.extract_strided_slice %37 {offsets = [2, 0], sizes = [1, 32], strides = [1, 1]} : vector<8x96xf32> to vector<1x32xf32>
    %93 = vector.extract_strided_slice %37 {offsets = [3, 0], sizes = [1, 32], strides = [1, 1]} : vector<8x96xf32> to vector<1x32xf32>
    %cst_31 = arith.constant dense<0.000000e+00> : vector<8xf32>
    %94 = vector.multi_reduction <add>, %91, %cst_31 [1] : vector<8x32xf32> to vector<8xf32>
    %95 = vector.shape_cast %94 : vector<8xf32> to vector<8x1xf32>
    %cst_32 = arith.constant 3.200000e+01 : f32
    %96 = vector.broadcast %cst_32 : f32 to vector<8x1xf32>
    %97 = arith.divf %95, %96 : vector<8x1xf32>
    %98 = vector.broadcast %97 : vector<8x1xf32> to vector<8x32xf32>
    %99 = arith.subf %91, %98 : vector<8x32xf32>
    %100 = arith.mulf %99, %99 : vector<8x32xf32>
    %cst_33 = arith.constant dense<0.000000e+00> : vector<8xf32>
    %101 = vector.multi_reduction <add>, %100, %cst_33 [1] : vector<8x32xf32> to vector<8xf32>
    %102 = vector.shape_cast %101 : vector<8xf32> to vector<8x1xf32>
    %cst_34 = arith.constant 3.200000e+01 : f32
    %103 = vector.broadcast %cst_34 : f32 to vector<8x1xf32>
    %104 = arith.divf %102, %103 : vector<8x1xf32>
    %105 = vector.broadcast %97 : vector<8x1xf32> to vector<8x32xf32>
    %106 = arith.subf %91, %105 : vector<8x32xf32>
    %cst_35 = arith.constant 9.99999996E-13 : f32
    %107 = vector.broadcast %cst_35 : f32 to vector<8x1xf32>
    %108 = arith.addf %104, %107 : vector<8x1xf32>
    %109 = math.rsqrt %108 : vector<8x1xf32>
    %110 = vector.broadcast %109 : vector<8x1xf32> to vector<8x32xf32>
    %111 = arith.mulf %106, %110 : vector<8x32xf32>
    %112 = vector.broadcast %92 : vector<1x32xf32> to vector<8x32xf32>
    %113 = arith.mulf %111, %112 : vector<8x32xf32>
    %114 = vector.broadcast %93 : vector<1x32xf32> to vector<8x32xf32>
    %115 = arith.addf %113, %114 : vector<8x32xf32>
    %c0_36 = arith.constant 0 : index
    %c0_37 = arith.constant 0 : index
    %c0_38 = arith.constant 0 : index
    %116 = vector.load %arg6[%c0_36, %c0_37, %c0_38] : memref<2x32x64xf32, #tpu.memory_space<vmem>>, vector<1x32x64xf32>
    %117 = vector.shape_cast %116 : vector<1x32x64xf32> to vector<32x64xf32>
    %cst_39 = arith.constant dense<0.000000e+00> : vector<8x64xf32>
    %118 = tpu.matmul %115, %117, %cst_39 {dimension_numbers = #tpu.dot_dimension_numbers<[1], [0], [0], [1], [0, 0, 1, 1], [], []>} : vector<8x32xf32>, vector<32x64xf32>, vector<8x64xf32> -> vector<8x64xf32>
    %119 = vector.extract_strided_slice %37 {offsets = [4, 0], sizes = [1, 64], strides = [1, 1]} : vector<8x96xf32> to vector<1x64xf32>
    %120 = vector.broadcast %119 : vector<1x64xf32> to vector<8x64xf32>
    %121 = arith.addf %118, %120 : vector<8x64xf32>
    %122 = arith.mulf %121, %121 : vector<8x64xf32>
    %123 = arith.mulf %121, %122 : vector<8x64xf32>
    %cst_40 = arith.constant 4.471500e-02 : f32
    %124 = vector.broadcast %cst_40 : f32 to vector<8x64xf32>
    %125 = arith.mulf %124, %123 : vector<8x64xf32>
    %126 = arith.addf %121, %125 : vector<8x64xf32>
    %cst_41 = arith.constant 0.797884583 : f32
    %127 = vector.broadcast %cst_41 : f32 to vector<8x64xf32>
    %128 = arith.mulf %127, %126 : vector<8x64xf32>
    %129 = math.tanh %128 : vector<8x64xf32>
    %cst_42 = arith.constant 1.000000e+00 : f32
    %130 = vector.broadcast %cst_42 : f32 to vector<8x64xf32>
    %131 = arith.addf %130, %129 : vector<8x64xf32>
    %cst_43 = arith.constant 5.000000e-01 : f32
    %132 = vector.broadcast %cst_43 : f32 to vector<8x64xf32>
    %133 = arith.mulf %132, %131 : vector<8x64xf32>
    %134 = arith.mulf %121, %133 : vector<8x64xf32>
    %c0_44 = arith.constant 0 : index
    %c0_45 = arith.constant 0 : index
    %c0_46 = arith.constant 0 : index
    %135 = vector.load %arg7[%c0_44, %c0_45, %c0_46] : memref<2x64x32xf32, #tpu.memory_space<vmem>>, vector<1x64x32xf32>
    %136 = vector.shape_cast %135 : vector<1x64x32xf32> to vector<64x32xf32>
    %cst_47 = arith.constant dense<0.000000e+00> : vector<8x32xf32>
    %137 = tpu.matmul %134, %136, %cst_47 {dimension_numbers = #tpu.dot_dimension_numbers<[1], [0], [0], [1], [0, 0, 1, 1], [], []>} : vector<8x64xf32>, vector<64x32xf32>, vector<8x32xf32> -> vector<8x32xf32>
    %138 = vector.extract_strided_slice %37 {offsets = [5, 0], sizes = [1, 32], strides = [1, 1]} : vector<8x96xf32> to vector<1x32xf32>
    %139 = vector.broadcast %138 : vector<1x32xf32> to vector<8x32xf32>
    %140 = arith.addf %137, %139 : vector<8x32xf32>
    %141 = arith.addf %115, %140 : vector<8x32xf32>
    %142 = vector.extract_strided_slice %37 {offsets = [6, 0], sizes = [1, 32], strides = [1, 1]} : vector<8x96xf32> to vector<1x32xf32>
    %143 = vector.extract_strided_slice %37 {offsets = [7, 0], sizes = [1, 32], strides = [1, 1]} : vector<8x96xf32> to vector<1x32xf32>
    %cst_48 = arith.constant dense<0.000000e+00> : vector<8xf32>
    %144 = vector.multi_reduction <add>, %141, %cst_48 [1] : vector<8x32xf32> to vector<8xf32>
    %145 = vector.shape_cast %144 : vector<8xf32> to vector<8x1xf32>
    %cst_49 = arith.constant 3.200000e+01 : f32
    %146 = vector.broadcast %cst_49 : f32 to vector<8x1xf32>
    %147 = arith.divf %145, %146 : vector<8x1xf32>
    %148 = vector.broadcast %147 : vector<8x1xf32> to vector<8x32xf32>
    %149 = arith.subf %141, %148 : vector<8x32xf32>
    %150 = arith.mulf %149, %149 : vector<8x32xf32>
    %cst_50 = arith.constant dense<0.000000e+00> : vector<8xf32>
    %151 = vector.multi_reduction <add>, %150, %cst_50 [1] : vector<8x32xf32> to vector<8xf32>
    %152 = vector.shape_cast %151 : vector<8xf32> to vector<8x1xf32>
    %cst_51 = arith.constant 3.200000e+01 : f32
    %153 = vector.broadcast %cst_51 : f32 to vector<8x1xf32>
    %154 = arith.divf %152, %153 : vector<8x1xf32>
    %155 = vector.broadcast %147 : vector<8x1xf32> to vector<8x32xf32>
    %156 = arith.subf %141, %155 : vector<8x32xf32>
    %cst_52 = arith.constant 9.99999996E-13 : f32
    %157 = vector.broadcast %cst_52 : f32 to vector<8x1xf32>
    %158 = arith.addf %154, %157 : vector<8x1xf32>
    %159 = math.rsqrt %158 : vector<8x1xf32>
    %160 = vector.broadcast %159 : vector<8x1xf32> to vector<8x32xf32>
    %161 = arith.mulf %156, %160 : vector<8x32xf32>
    %162 = vector.broadcast %142 : vector<1x32xf32> to vector<8x32xf32>
    %163 = arith.mulf %161, %162 : vector<8x32xf32>
    %164 = vector.broadcast %143 : vector<1x32xf32> to vector<8x32xf32>
    %165 = arith.addf %163, %164 : vector<8x32xf32>
    %c1 = arith.constant 1 : index
    %c0_53 = arith.constant 0 : index
    %c0_54 = arith.constant 0 : index
    %166 = vector.load %arg8[%c1, %c0_53, %c0_54] : memref<2x8x96xf32, #tpu.memory_space<vmem>>, vector<1x8x96xf32>
    %167 = vector.shape_cast %166 : vector<1x8x96xf32> to vector<8x96xf32>
    %c1_55 = arith.constant 1 : index
    %c0_56 = arith.constant 0 : index
    %c0_57 = arith.constant 0 : index
    %168 = vector.load %arg4[%c1_55, %c0_56, %c0_57] : memref<2x32x96xf32, #tpu.memory_space<vmem>>, vector<1x32x96xf32>
    %169 = vector.shape_cast %168 : vector<1x32x96xf32> to vector<32x96xf32>
    %cst_58 = arith.constant dense<0.000000e+00> : vector<8x96xf32>
    %170 = tpu.matmul %165, %169, %cst_58 {dimension_numbers = #tpu.dot_dimension_numbers<[1], [0], [0], [1], [0, 0, 1, 1], [], []>} : vector<8x32xf32>, vector<32x96xf32>, vector<8x96xf32> -> vector<8x96xf32>
    %171 = vector.extract_strided_slice %167 {offsets = [0, 0], sizes = [1, 96], strides = [1, 1]} : vector<8x96xf32> to vector<1x96xf32>
    %172 = vector.broadcast %171 : vector<1x96xf32> to vector<8x96xf32>
    %173 = arith.addf %170, %172 : vector<8x96xf32>
    %174 = vector.extract_strided_slice %173 {offsets = [0, 0], sizes = [8, 16], strides = [1, 1]} : vector<8x96xf32> to vector<8x16xf32>
    %175 = vector.extract_strided_slice %173 {offsets = [0, 32], sizes = [8, 16], strides = [1, 1]} : vector<8x96xf32> to vector<8x16xf32>
    %176 = vector.extract_strided_slice %173 {offsets = [0, 64], sizes = [8, 16], strides = [1, 1]} : vector<8x96xf32> to vector<8x16xf32>
    %177 = tpu.transpose %175, [1, 0] : vector<8x16xf32> -> vector<16x8xf32>
    %cst_59 = arith.constant dense<0.000000e+00> : vector<8x8xf32>
    %178 = tpu.matmul %174, %177, %cst_59 {dimension_numbers = #tpu.dot_dimension_numbers<[1], [0], [0], [1], [0, 0, 1, 1], [], []>} : vector<8x16xf32>, vector<16x8xf32>, vector<8x8xf32> -> vector<8x8xf32>
    %cst_60 = arith.constant 2.500000e-01 : f32
    %179 = vector.broadcast %cst_60 : f32 to vector<8x8xf32>
    %180 = arith.mulf %178, %179 : vector<8x8xf32>
    %181 = vector.broadcast %35 : vector<1x8xf32> to vector<8x8xf32>
    %182 = arith.addf %180, %181 : vector<8x8xf32>
    %cst_61 = arith.constant dense<0xFF800000> : vector<8xf32>
    %183 = vector.multi_reduction <maximumf>, %182, %cst_61 [1] : vector<8x8xf32> to vector<8xf32>
    %184 = vector.shape_cast %183 : vector<8xf32> to vector<8x1xf32>
    %185 = vector.broadcast %184 : vector<8x1xf32> to vector<8x8xf32>
    %186 = arith.subf %182, %185 : vector<8x8xf32>
    %187 = math.exp %186 : vector<8x8xf32>
    %cst_62 = arith.constant dense<0.000000e+00> : vector<8xf32>
    %188 = vector.multi_reduction <add>, %187, %cst_62 [1] : vector<8x8xf32> to vector<8xf32>
    %189 = vector.shape_cast %188 : vector<8xf32> to vector<8x1xf32>
    %190 = tpu.reciprocal %189 {approx = true} : vector<8x1xf32> -> vector<8x1xf32>
    %191 = vector.broadcast %190 : vector<8x1xf32> to vector<8x8xf32>
    %192 = arith.mulf %187, %191 : vector<8x8xf32>
    %cst_63 = arith.constant dense<0.000000e+00> : vector<8x16xf32>
    %193 = tpu.matmul %192, %176, %cst_63 {dimension_numbers = #tpu.dot_dimension_numbers<[1], [0], [0], [1], [0, 0, 1, 1], [], []>} : vector<8x8xf32>, vector<8x16xf32>, vector<8x16xf32> -> vector<8x16xf32>
    %194 = vector.extract_strided_slice %173 {offsets = [0, 16], sizes = [8, 16], strides = [1, 1]} : vector<8x96xf32> to vector<8x16xf32>
    %195 = vector.extract_strided_slice %173 {offsets = [0, 48], sizes = [8, 16], strides = [1, 1]} : vector<8x96xf32> to vector<8x16xf32>
    %196 = vector.extract_strided_slice %173 {offsets = [0, 80], sizes = [8, 16], strides = [1, 1]} : vector<8x96xf32> to vector<8x16xf32>
    %197 = tpu.transpose %195, [1, 0] : vector<8x16xf32> -> vector<16x8xf32>
    %cst_64 = arith.constant dense<0.000000e+00> : vector<8x8xf32>
    %198 = tpu.matmul %194, %197, %cst_64 {dimension_numbers = #tpu.dot_dimension_numbers<[1], [0], [0], [1], [0, 0, 1, 1], [], []>} : vector<8x16xf32>, vector<16x8xf32>, vector<8x8xf32> -> vector<8x8xf32>
    %cst_65 = arith.constant 2.500000e-01 : f32
    %199 = vector.broadcast %cst_65 : f32 to vector<8x8xf32>
    %200 = arith.mulf %198, %199 : vector<8x8xf32>
    %201 = vector.broadcast %35 : vector<1x8xf32> to vector<8x8xf32>
    %202 = arith.addf %200, %201 : vector<8x8xf32>
    %cst_66 = arith.constant dense<0xFF800000> : vector<8xf32>
    %203 = vector.multi_reduction <maximumf>, %202, %cst_66 [1] : vector<8x8xf32> to vector<8xf32>
    %204 = vector.shape_cast %203 : vector<8xf32> to vector<8x1xf32>
    %205 = vector.broadcast %204 : vector<8x1xf32> to vector<8x8xf32>
    %206 = arith.subf %202, %205 : vector<8x8xf32>
    %207 = math.exp %206 : vector<8x8xf32>
    %cst_67 = arith.constant dense<0.000000e+00> : vector<8xf32>
    %208 = vector.multi_reduction <add>, %207, %cst_67 [1] : vector<8x8xf32> to vector<8xf32>
    %209 = vector.shape_cast %208 : vector<8xf32> to vector<8x1xf32>
    %210 = tpu.reciprocal %209 {approx = true} : vector<8x1xf32> -> vector<8x1xf32>
    %211 = vector.broadcast %210 : vector<8x1xf32> to vector<8x8xf32>
    %212 = arith.mulf %207, %211 : vector<8x8xf32>
    %cst_68 = arith.constant dense<0.000000e+00> : vector<8x16xf32>
    %213 = tpu.matmul %212, %196, %cst_68 {dimension_numbers = #tpu.dot_dimension_numbers<[1], [0], [0], [1], [0, 0, 1, 1], [], []>} : vector<8x8xf32>, vector<8x16xf32>, vector<8x16xf32> -> vector<8x16xf32>
    %214 = tpu.concatenate %193, %213 in 1 : vector<8x16xf32>, vector<8x16xf32> -> vector<8x32xf32>
    %c1_69 = arith.constant 1 : index
    %c0_70 = arith.constant 0 : index
    %c0_71 = arith.constant 0 : index
    %215 = vector.load %arg5[%c1_69, %c0_70, %c0_71] : memref<2x32x32xf32, #tpu.memory_space<vmem>>, vector<1x32x32xf32>
    %216 = vector.shape_cast %215 : vector<1x32x32xf32> to vector<32x32xf32>
    %cst_72 = arith.constant dense<0.000000e+00> : vector<8x32xf32>
    %217 = tpu.matmul %214, %216, %cst_72 {dimension_numbers = #tpu.dot_dimension_numbers<[1], [0], [0], [1], [0, 0, 1, 1], [], []>} : vector<8x32xf32>, vector<32x32xf32>, vector<8x32xf32> -> vector<8x32xf32>
    %218 = vector.extract_strided_slice %167 {offsets = [1, 0], sizes = [1, 32], strides = [1, 1]} : vector<8x96xf32> to vector<1x32xf32>
    %219 = vector.broadcast %218 : vector<1x32xf32> to vector<8x32xf32>
    %220 = arith.addf %217, %219 : vector<8x32xf32>
    %221 = arith.addf %165, %220 : vector<8x32xf32>
    %222 = vector.extract_strided_slice %167 {offsets = [2, 0], sizes = [1, 32], strides = [1, 1]} : vector<8x96xf32> to vector<1x32xf32>
    %223 = vector.extract_strided_slice %167 {offsets = [3, 0], sizes = [1, 32], strides = [1, 1]} : vector<8x96xf32> to vector<1x32xf32>
    %cst_73 = arith.constant dense<0.000000e+00> : vector<8xf32>
    %224 = vector.multi_reduction <add>, %221, %cst_73 [1] : vector<8x32xf32> to vector<8xf32>
    %225 = vector.shape_cast %224 : vector<8xf32> to vector<8x1xf32>
    %cst_74 = arith.constant 3.200000e+01 : f32
    %226 = vector.broadcast %cst_74 : f32 to vector<8x1xf32>
    %227 = arith.divf %225, %226 : vector<8x1xf32>
    %228 = vector.broadcast %227 : vector<8x1xf32> to vector<8x32xf32>
    %229 = arith.subf %221, %228 : vector<8x32xf32>
    %230 = arith.mulf %229, %229 : vector<8x32xf32>
    %cst_75 = arith.constant dense<0.000000e+00> : vector<8xf32>
    %231 = vector.multi_reduction <add>, %230, %cst_75 [1] : vector<8x32xf32> to vector<8xf32>
    %232 = vector.shape_cast %231 : vector<8xf32> to vector<8x1xf32>
    %cst_76 = arith.constant 3.200000e+01 : f32
    %233 = vector.broadcast %cst_76 : f32 to vector<8x1xf32>
    %234 = arith.divf %232, %233 : vector<8x1xf32>
    %235 = vector.broadcast %227 : vector<8x1xf32> to vector<8x32xf32>
    %236 = arith.subf %221, %235 : vector<8x32xf32>
    %cst_77 = arith.constant 9.99999996E-13 : f32
    %237 = vector.broadcast %cst_77 : f32 to vector<8x1xf32>
    %238 = arith.addf %234, %237 : vector<8x1xf32>
    %239 = math.rsqrt %238 : vector<8x1xf32>
    %240 = vector.broadcast %239 : vector<8x1xf32> to vector<8x32xf32>
    %241 = arith.mulf %236, %240 : vector<8x32xf32>
    %242 = vector.broadcast %222 : vector<1x32xf32> to vector<8x32xf32>
    %243 = arith.mulf %241, %242 : vector<8x32xf32>
    %244 = vector.broadcast %223 : vector<1x32xf32> to vector<8x32xf32>
    %245 = arith.addf %243, %244 : vector<8x32xf32>
    %c1_78 = arith.constant 1 : index
    %c0_79 = arith.constant 0 : index
    %c0_80 = arith.constant 0 : index
    %246 = vector.load %arg6[%c1_78, %c0_79, %c0_80] : memref<2x32x64xf32, #tpu.memory_space<vmem>>, vector<1x32x64xf32>
    %247 = vector.shape_cast %246 : vector<1x32x64xf32> to vector<32x64xf32>
    %cst_81 = arith.constant dense<0.000000e+00> : vector<8x64xf32>
    %248 = tpu.matmul %245, %247, %cst_81 {dimension_numbers = #tpu.dot_dimension_numbers<[1], [0], [0], [1], [0, 0, 1, 1], [], []>} : vector<8x32xf32>, vector<32x64xf32>, vector<8x64xf32> -> vector<8x64xf32>
    %249 = vector.extract_strided_slice %167 {offsets = [4, 0], sizes = [1, 64], strides = [1, 1]} : vector<8x96xf32> to vector<1x64xf32>
    %250 = vector.broadcast %249 : vector<1x64xf32> to vector<8x64xf32>
    %251 = arith.addf %248, %250 : vector<8x64xf32>
    %252 = arith.mulf %251, %251 : vector<8x64xf32>
    %253 = arith.mulf %251, %252 : vector<8x64xf32>
    %cst_82 = arith.constant 4.471500e-02 : f32
    %254 = vector.broadcast %cst_82 : f32 to vector<8x64xf32>
    %255 = arith.mulf %254, %253 : vector<8x64xf32>
    %256 = arith.addf %251, %255 : vector<8x64xf32>
    %cst_83 = arith.constant 0.797884583 : f32
    %257 = vector.broadcast %cst_83 : f32 to vector<8x64xf32>
    %258 = arith.mulf %257, %256 : vector<8x64xf32>
    %259 = math.tanh %258 : vector<8x64xf32>
    %cst_84 = arith.constant 1.000000e+00 : f32
    %260 = vector.broadcast %cst_84 : f32 to vector<8x64xf32>
    %261 = arith.addf %260, %259 : vector<8x64xf32>
    %cst_85 = arith.constant 5.000000e-01 : f32
    %262 = vector.broadcast %cst_85 : f32 to vector<8x64xf32>
    %263 = arith.mulf %262, %261 : vector<8x64xf32>
    %264 = arith.mulf %251, %263 : vector<8x64xf32>
    %c1_86 = arith.constant 1 : index
    %c0_87 = arith.constant 0 : index
    %c0_88 = arith.constant 0 : index
    %265 = vector.load %arg7[%c1_86, %c0_87, %c0_88] : memref<2x64x32xf32, #tpu.memory_space<vmem>>, vector<1x64x32xf32>
    %266 = vector.shape_cast %265 : vector<1x64x32xf32> to vector<64x32xf32>
    %cst_89 = arith.constant dense<0.000000e+00> : vector<8x32xf32>
    %267 = tpu.matmul %264, %266, %cst_89 {dimension_numbers = #tpu.dot_dimension_numbers<[1], [0], [0], [1], [0, 0, 1, 1], [], []>} : vector<8x64xf32>, vector<64x32xf32>, vector<8x32xf32> -> vector<8x32xf32>
    %268 = vector.extract_strided_slice %167 {offsets = [5, 0], sizes = [1, 32], strides = [1, 1]} : vector<8x96xf32> to vector<1x32xf32>
    %269 = vector.broadcast %268 : vector<1x32xf32> to vector<8x32xf32>
    %270 = arith.addf %267, %269 : vector<8x32xf32>
    %271 = arith.addf %245, %270 : vector<8x32xf32>
    %272 = vector.extract_strided_slice %167 {offsets = [6, 0], sizes = [1, 32], strides = [1, 1]} : vector<8x96xf32> to vector<1x32xf32>
    %273 = vector.extract_strided_slice %167 {offsets = [7, 0], sizes = [1, 32], strides = [1, 1]} : vector<8x96xf32> to vector<1x32xf32>
    %cst_90 = arith.constant dense<0.000000e+00> : vector<8xf32>
    %274 = vector.multi_reduction <add>, %271, %cst_90 [1] : vector<8x32xf32> to vector<8xf32>
    %275 = vector.shape_cast %274 : vector<8xf32> to vector<8x1xf32>
    %cst_91 = arith.constant 3.200000e+01 : f32
    %276 = vector.broadcast %cst_91 : f32 to vector<8x1xf32>
    %277 = arith.divf %275, %276 : vector<8x1xf32>
    %278 = vector.broadcast %277 : vector<8x1xf32> to vector<8x32xf32>
    %279 = arith.subf %271, %278 : vector<8x32xf32>
    %280 = arith.mulf %279, %279 : vector<8x32xf32>
    %cst_92 = arith.constant dense<0.000000e+00> : vector<8xf32>
    %281 = vector.multi_reduction <add>, %280, %cst_92 [1] : vector<8x32xf32> to vector<8xf32>
    %282 = vector.shape_cast %281 : vector<8xf32> to vector<8x1xf32>
    %cst_93 = arith.constant 3.200000e+01 : f32
    %283 = vector.broadcast %cst_93 : f32 to vector<8x1xf32>
    %284 = arith.divf %282, %283 : vector<8x1xf32>
    %285 = vector.broadcast %277 : vector<8x1xf32> to vector<8x32xf32>
    %286 = arith.subf %271, %285 : vector<8x32xf32>
    %cst_94 = arith.constant 9.99999996E-13 : f32
    %287 = vector.broadcast %cst_94 : f32 to vector<8x1xf32>
    %288 = arith.addf %284, %287 : vector<8x1xf32>
    %289 = math.rsqrt %288 : vector<8x1xf32>
    %290 = vector.broadcast %289 : vector<8x1xf32> to vector<8x32xf32>
    %291 = arith.mulf %286, %290 : vector<8x32xf32>
    %292 = vector.broadcast %272 : vector<1x32xf32> to vector<8x32xf32>
    %293 = arith.mulf %291, %292 : vector<8x32xf32>
    %294 = vector.broadcast %273 : vector<1x32xf32> to vector<8x32xf32>
    %295 = arith.addf %293, %294 : vector<8x32xf32>
    %c0_95 = arith.constant 0 : index
    %c0_96 = arith.constant 0 : index
    %296 = vector.load %arg1[%c0_95, %c0_96] : memref<3x2xi32, #tpu.memory_space<vmem>>, vector<3x2xi32>
    %297 = vector.extract_strided_slice %296 {offsets = [0, 0], sizes = [3, 1], strides = [1, 1]} : vector<3x2xi32> to vector<3x1xi32>
    %298 = vector.extract_strided_slice %296 {offsets = [0, 1], sizes = [3, 1], strides = [1, 1]} : vector<3x2xi32> to vector<3x1xi32>
    %299 = tpu.iota {dimensions = array<i32: 1>} : vector<3x8xi32>
    %300 = vector.broadcast %297 : vector<3x1xi32> to vector<3x8xi32>
    %301 = arith.cmpi sge, %299, %300 : vector<3x8xi32>
    %302 = vector.broadcast %298 : vector<3x1xi32> to vector<3x8xi32>
    %303 = arith.cmpi slt, %299, %302 : vector<3x8xi32>
    %304 = arith.andi %301, %303 : vector<3x8xi1>
    %305 = arith.extui %304 : vector<3x8xi1> to vector<3x8xi32>
    %306 = arith.sitofp %305 : vector<3x8xi32> to vector<3x8xf32>
    %cst_97 = arith.constant dense<0.000000e+00> : vector<3x32xf32>
    %307 = tpu.matmul %306, %295, %cst_97 {dimension_numbers = #tpu.dot_dimension_numbers<[1], [0], [0], [1], [0, 0, 1, 1], [], []>} : vector<3x8xf32>, vector<8x32xf32>, vector<3x32xf32> -> vector<3x32xf32>
    %308 = arith.subi %298, %297 : vector<3x1xi32>
    %309 = arith.sitofp %308 : vector<3x1xi32> to vector<3x1xf32>
    %310 = vector.broadcast %309 : vector<3x1xf32> to vector<3x32xf32>
    %311 = arith.divf %307, %310 : vector<3x32xf32>
    %c0_98 = arith.constant 0 : index
    %c0_99 = arith.constant 0 : index
    %312 = vector.load %arg9[%c0_98, %c0_99] : memref<3x32xf32, #tpu.memory_space<vmem>>, vector<3x32xf32>
    tpu.vector_store %arg9[%c0_98, %c0_99], %311 {strides = array<i32>} : memref<3x32xf32, #tpu.memory_space<vmem>>, vector<3x32xf32>,
    return
  }
}

</mosaic_0001>

<llo_original>
// kernel: _forward_jit.1
$region0: #{_forward_jit.1}
  #allocation0 [shape = 'u32[]', space=smem, size = 0x4, offset = 0x4, fixed_abs, tag = 'smem constant byte address 0x4 - core index']
  #allocation1 [shape = 'u32[144,128]{1,0:T(1,128)}', space=vmem, size = 0x12000, scoped, tag = 'internal scratch']
  %s0 = inlined_call_operand.vmem [shape: s32[8,1], index: 0, kind: input, shape index: {}]
  %s1 = inlined_call_operand.vmem [shape: s32[3,2], index: 1, kind: input, shape index: {}]
  %s2 = inlined_call_operand.vmem [shape: f32[64,32], index: 2, kind: input, shape index: {}]
  %s3 = inlined_call_operand.vmem [shape: f32[19,32], index: 3, kind: input, shape index: {}]
  %s4 = inlined_call_operand.vmem [shape: f32[2,32,96], index: 4, kind: input, shape index: {}]
  %s5 = inlined_call_operand.vmem [shape: f32[2,32,32], index: 5, kind: input, shape index: {}]
  %s6 = inlined_call_operand.vmem [shape: f32[2,32,64], index: 6, kind: input, shape index: {}]
  %s7 = inlined_call_operand.vmem [shape: f32[2,64,32], index: 7, kind: input, shape index: {}]
  %s8 = inlined_call_operand.vmem [shape: f32[2,8,96], index: 8, kind: input, shape index: {}]
  %s9 = inlined_call_operand.hbm [shape: f32[3,32], index: 9, kind: output, shape index: {}]
  %s10 = sld [smem:[#allocation0]]
  $region46: #{_forward_jit.1} parent=0
    _
  %s12 = ssub.s32 1, %s10
  %s13 = scalar_select 0, %s12, %s10
  $region1: #{_forward_jit.1} parent=0
    #allocation2 [shape = 'u8[2048]{0}', space=vmem, size = 0x800, scoped, tag = 'output window, operand 0, single buffered']
    #allocation3 [shape = 's32[1]{0}', space=sflag, size = 0x4, scoped, tag = 'scoped memory for _forward_jit.1']
    %14 = vsyncpa [#allocation3], 0
    // Predicated region
    $region2: #{_forward_jit.1} parent=1 // pred_check
      _
    $region3: #{_forward_jit.1} parent=1 // pred_check_branch
      %16 = sbr.rel (0) target = $region5
    $region4: #{_forward_jit.1} parent=1 // pred_region
      _
    $region5: #{_forward_jit.1} parent=1 // pred_fallthru
      _
    // Predicated region
    $region6: #{_forward_jit.1} parent=1 // pred_check
      _
    $region7: #{_forward_jit.1} parent=1 // pred_check_branch
      %18 = sbr.rel (0) target = $region9
    $region8: #{_forward_jit.1} parent=1 // pred_region
      _
    $region9: #{_forward_jit.1} parent=1 // pred_fallthru
      _
    // Predicated region
    $region10: #{_forward_jit.1} parent=1 // pred_check
      _
    $region11: #{_forward_jit.1} parent=1 // pred_check_branch
      %20 = sbr.rel (0) target = $region13
    $region12: #{_forward_jit.1} parent=1 // pred_region
      _
    $region13: #{_forward_jit.1} parent=1 // pred_fallthru
      _
    // Predicated region
    $region14: #{_forward_jit.1} parent=1 // pred_check
      _
    $region15: #{_forward_jit.1} parent=1 // pred_check_branch
      %22 = sbr.rel (0) target = $region17
    $region16: #{_forward_jit.1} parent=1 // pred_region
      _
    $region17: #{_forward_jit.1} parent=1 // pred_fallthru
      _
    // Predicated region
    $region18: #{_forward_jit.1} parent=1 // pred_check
      _
    $region19: #{_forward_jit.1} parent=1 // pred_check_branch
      %24 = sbr.rel (0) target = $region21
    $region20: #{_forward_jit.1} parent=1 // pred_region
      _
    $region21: #{_forward_jit.1} parent=1 // pred_fallthru
      _
    // Predicated region
    $region22: #{_forward_jit.1} parent=1 // pred_check
      _
    $region23: #{_forward_jit.1} parent=1 // pred_check_branch
      %26 = sbr.rel (0) target = $region25
    $region24: #{_forward_jit.1} parent=1 // pred_region
      _
    $region25: #{_forward_jit.1} parent=1 // pred_fallthru
      _
    // Predicated region
    $region26: #{_forward_jit.1} parent=1 // pred_check
      _
    $region27: #{_forward_jit.1} parent=1 // pred_check_branch
      %28 = sbr.rel (0) target = $region29
    $region28: #{_forward_jit.1} parent=1 // pred_region
      _
    $region29: #{_forward_jit.1} parent=1 // pred_fallthru
      _
    // Predicated region
    $region30: #{_forward_jit.1} parent=1 // pred_check
      _
    $region31: #{_forward_jit.1} parent=1 // pred_check_branch
      %30 = sbr.rel (0) target = $region33
    $region32: #{_forward_jit.1} parent=1 // pred_region
      _
    $region33: #{_forward_jit.1} parent=1 // pred_fallthru
      _
    // Predicated region
    $region34: #{_forward_jit.1} parent=1 // pred_check
      _
    $region35: #{_forward_jit.1} parent=1 // pred_check_branch
      %32 = sbr.rel (0) target = $region37
    $region36: #{_forward_jit.1} parent=1 // pred_region
      _
    $region37: #{_forward_jit.1} parent=1 // pred_fallthru
      _
    %v33 = vld [vmem:[%s0] sm:$0xff]
    %v34 = vlaneseq
    %v35 = vand.u32 %v34, 127
    %36 = vset.pattern.permute.xlu0 0
    %37 = vperm.xlu0 %36, %v33
    %v38 = vpop.permute.xlu0 %37
    %vm39 = vcmp.eq.s32.totalorder %v35, %v38
    %v40 = vsel %vm39, 1, 0
    %v41 = vcvt.s32.f32 %v40
    %v42 = vld [vmem:[%s2] sm:$0xff]
    %v43 = vld [vmem:[%s2 + $0x8] sm:$0xff]
    %v44 = vld [vmem:[%s2 + $0x10] sm:$0xff]
    %v45 = vld [vmem:[%s2 + $0x18] sm:$0xff]
    %v46 = vld [vmem:[%s2 + $0x20] sm:$0xff]
    %v47 = vld [vmem:[%s2 + $0x28] sm:$0xff]
    %v48 = vld [vmem:[%s2 + $0x30] sm:$0xff]
    %v49 = vld [vmem:[%s2 + $0x38] sm:$0xff]
    %v50 = vld [vmem:[%s3] sm:$0xff]
    %v51 = vld [vmem:[%s3 + $0x10] sm:$0x7]
    %vm52 = vcmask 523264
    %v54 = vsel %vm52, %v41, 0
    %56 = vmatprep.subr.mxu0 0.0
    %57 = vmatpush1.msra.mxu0 %v42
    %58 = vmatprep.subr.mxu0 0.0
    %59 = vmatpush1.msra.mxu0 %v43
    %60 = vmatprep.subr.mxu0 0.0
    %61 = vmatpush1.msra.mxu0 %v44
    %62 = vmatprep.subr.mxu0 0.0
    %63 = vmatpush1.msra.mxu0 %v45
    %64 = vmatprep.subr.mxu0 0.0
    %65 = vmatpush1.msra.mxu0 %v46
    %66 = vmatprep.subr.mxu0 0.0
    %67 = vmatpush1.msra.mxu0 %v47
    %68 = vmatprep.subr.mxu0 0.0
    %69 = vmatpush1.msra.mxu0 %v48
    %70 = vmatprep.subr.mxu0 0.0
    %71 = vmatpush1.msra.mxu0 %v49
    %72 = vmatprep.subr.mxu0 0.0
    %73 = vmatpush1.msra.mxu0 0.0
    %74 = vmatprep.subr.mxu0 0.0
    %75 = vmatpush1.msra.mxu0 0.0
    %76 = vmatprep.subr.mxu0 0.0
    %77 = vmatpush1.msra.mxu0 0.0
    %78 = vmatprep.subr.mxu0 0.0
    %79 = vmatpush1.msra.mxu0 0.0
    %80 = vmatprep.subr.mxu0 0.0
    %81 = vmatpush1.msra.mxu0 0.0
    %82 = vmatprep.subr.mxu0 0.0
    %83 = vmatpush1.msra.mxu0 0.0
    %84 = vmatprep.subr.mxu0 0.0
    %85 = vmatpush1.msra.mxu0 0.0
    %86 = vmatprep.subr.mxu0 0.0
    %87 = vmatpush1.msra.mxu0 0.0
    %88 = vmatprep.subr.mxu0 0.0
    %89 = vmatpush1.msra.mxu0 0.0
    %90 = vmatprep.subr.mxu0 0.0
    %91 = vmatpush1.msra.mxu0 0.0
    %92 = vmatprep.subr.mxu0 0.0
    %93 = vmatpush1.msra.mxu0 0.0
    %94 = vmatprep.subr.mxu0 0.0
    %95 = vmatpush1.msra.mxu0 0.0
    %96 = vmatprep.subr.mxu0 0.0
    %97 = vmatpush1.msra.mxu0 0.0
    %98 = vmatprep.subr.mxu0 0.0
    %99 = vmatpush1.msra.mxu0 0.0
    %100 = vmatprep.subr.mxu0 0.0
    %101 = vmatpush1.msra.mxu0 0.0
    %102 = vmatprep.subr.mxu0 0.0
    %103 = vmatpush1.msra.mxu0 0.0
    %104 = vmatprep.subr.mxu0 0.0
    %105 = vmatpush1.msra.mxu0 0.0
    %106 = vmatprep.subr.mxu0 0.0
    %107 = vmatpush1.msra.mxu0 0.0
    %108 = vmatprep.subr.mxu0 0.0
    %109 = vmatpush1.msra.mxu0 0.0
    %110 = vmatprep.subr.mxu0 0.0
    %111 = vmatpush1.msra.mxu0 0.0
    %112 = vmatprep.subr.mxu0 0.0
    %113 = vmatpush1.msra.mxu0 0.0
    %114 = vmatprep.subr.mxu0 0.0
    %115 = vmatpush1.msra.mxu0 0.0
    %116 = vmatprep.subr.mxu0 0.0
    %117 = vmatpush1.msra.mxu0 0.0
    %118 = vmatprep.subr.mxu0 0.0
    %119 = vmatpush1.msra.mxu0 0.0
    %120 = vmatprep.mubr.f32.mxu0 0.0
    %121 = vmatmul.mubr.f32.gmra.mrb[0].mxu0 %v54
    %v122 = vpop.f32.mrb[0].mxu0
    %v123 = vadd.f32 %v50, %v122
    %v124 = vpop.f32.mrb[0].mxu0
    %125 = vdwg.mxu0
    %vm126 = vcmask 261120
    %v127 = vsel %vm126, %v123, 0.0
    %128 = vadd.xlane.f32.xlu0 %v127
    %v129 = vpop.xlane.xlu0 %128
    %v130 = vrcp.pop 32.0
    %v131 = vmul.f32 %v129, %v130
    %v132 = vsub.f32 %v123, %v131
    %v133 = vmul.f32 %v132, %v132
    %v134 = vsel %vm126, %v133, 0.0
    %135 = vadd.xlane.f32.xlu0 %v134
    %v136 = vpop.xlane.xlu0 %135
    %v137 = vmul.f32 %v136, %v130
    %v138 = vadd.f32 %v137, 1e-12
    %v139 = vrsqrt.pop %v138
    %v140 = vmul.f32 %v132, %v139
    %v141 = vlaneseq
    %v142 = vshrl.u32 %v141, 7
    %v143 = vsub.s32 0, %v142
    %v144 = vrot.slane %v51, %v143
    %v145 = vmul.f32 %v140, %v144
    %v146 = vlaneseq
    %v147 = vshrl.u32 %v146, 7
    %v148 = vsub.s32 1, %v147
    %v149 = vrot.slane %v51, %v148
    %v150 = vadd.f32 %v145, %v149
    %v151 = vld [vmem:[%s8] sm:$0xff]
    %v152 = vld [vmem:[%s4] sm:$0xff]
    %v153 = vld [vmem:[%s4 + $0x8] sm:$0xff]
    %v154 = vld [vmem:[%s4 + $0x10] sm:$0xff]
    %v155 = vld [vmem:[%s4 + $0x18] sm:$0xff]
    %v156 = vlaneseq
    %v157 = vshrl.u32 %v156, 7
    %v158 = vsub.s32 0, %v157
    %v159 = vrot.slane %v151, %v158
    %v161 = vsel %vm126, %v150, 0
    %163 = vmatprep.subr.mxu0 0.0
    %164 = vmatpush1.msra.mxu0 %v152
    %165 = vmatprep.subr.mxu0 0.0
    %166 = vmatpush1.msra.mxu0 %v153
    %167 = vmatprep.subr.mxu0 0.0
    %168 = vmatpush1.msra.mxu0 %v154
    %169 = vmatprep.subr.mxu0 0.0
    %170 = vmatpush1.msra.mxu0 %v155
    %171 = vmatprep.subr.mxu0 0.0
    %172 = vmatpush1.msra.mxu0 0.0
    %173 = vmatprep.subr.mxu0 0.0
    %174 = vmatpush1.msra.mxu0 0.0
    %175 = vmatprep.subr.mxu0 0.0
    %176 = vmatpush1.msra.mxu0 0.0
    %177 = vmatprep.subr.mxu0 0.0
    %178 = vmatpush1.msra.mxu0 0.0
    %179 = vmatprep.subr.mxu0 0.0
    %180 = vmatpush1.msra.mxu0 0.0
    %181 = vmatprep.subr.mxu0 0.0
    %182 = vmatpush1.msra.mxu0 0.0
    %183 = vmatprep.subr.mxu0 0.0
    %184 = vmatpush1.msra.mxu0 0.0
    %185 = vmatprep.subr.mxu0 0.0
    %186 = vmatpush1.msra.mxu0 0.0
    %187 = vmatprep.subr.mxu0 0.0
    %188 = vmatpush1.msra.mxu0 0.0
    %189 = vmatprep.subr.mxu0 0.0
    %190 = vmatpush1.msra.mxu0 0.0
    %191 = vmatprep.subr.mxu0 0.0
    %192 = vmatpush1.msra.mxu0 0.0
    %193 = vmatprep.subr.mxu0 0.0
    %194 = vmatpush1.msra.mxu0 0.0
    %195 = vmatprep.subr.mxu0 0.0
    %196 = vmatpush1.msra.mxu0 0.0
    %197 = vmatprep.subr.mxu0 0.0
    %198 = vmatpush1.msra.mxu0 0.0
    %199 = vmatprep.subr.mxu0 0.0
    %200 = vmatpush1.msra.mxu0 0.0
    %201 = vmatprep.subr.mxu0 0.0
    %202 = vmatpush1.msra.mxu0 0.0
    %203 = vmatprep.subr.mxu0 0.0
    %204 = vmatpush1.msra.mxu0 0.0
    %205 = vmatprep.subr.mxu0 0.0
    %206 = vmatpush1.msra.mxu0 0.0
    %207 = vmatprep.subr.mxu0 0.0
    %208 = vmatpush1.msra.mxu0 0.0
    %209 = vmatprep.subr.mxu0 0.0
    %210 = vmatpush1.msra.mxu0 0.0
    %211 = vmatprep.subr.mxu0 0.0
    %212 = vmatpush1.msra.mxu0 0.0
    %213 = vmatprep.subr.mxu0 0.0
    %214 = vmatpush1.msra.mxu0 0.0
    %215 = vmatprep.subr.mxu0 0.0
    %216 = vmatpush1.msra.mxu0 0.0
    %217 = vmatprep.subr.mxu0 0.0
    %218 = vmatpush1.msra.mxu0 0.0
    %219 = vmatprep.subr.mxu0 0.0
    %220 = vmatpush1.msra.mxu0 0.0
    %221 = vmatprep.subr.mxu0 0.0
    %222 = vmatpush1.msra.mxu0 0.0
    %223 = vmatprep.subr.mxu0 0.0
    %224 = vmatpush1.msra.mxu0 0.0
    %225 = vmatprep.subr.mxu0 0.0
    %226 = vmatpush1.msra.mxu0 0.0
    %227 = vmatprep.mubr.f32.mxu0 0.0
    %228 = vmatmul.mubr.f32.gmra.mrb[0].mxu0 %v161
    %v229 = vpop.f32.mrb[0].mxu0
    %v230 = vadd.f32 %v159, %v229
    %v231 = vpop.f32.mrb[0].mxu0
    %232 = vdwg.mxu0
    %234 = vrot.lane.b32.xlu0 %v230, 96
    %v235 = vpop.permute.xlu0 %234
    %vm236 = vcmask 130048
    %v237 = vsel %vm236, %v230, 0
    %v239 = vsel %vm236, %v235, 0
    %241 = vmatprep.subr.mxu0 0.0
    %242 = vmatpush1.xpose.msra.mxu0 %v239
    %243 = vmatprep.subr.mxu0 0.0
    %244 = vmatpush1.xpose.msra.mxu0 0.0
    %245 = vmatprep.subr.mxu0 0.0
    %246 = vmatpush1.xpose.msra.mxu0 0.0
    %247 = vmatprep.subr.mxu0 0.0
    %248 = vmatpush1.xpose.msra.mxu0 0.0
    %249 = vmatprep.subr.mxu0 0.0
    %250 = vmatpush1.xpose.msra.mxu0 0.0
    %251 = vmatprep.subr.mxu0 0.0
    %252 = vmatpush1.xpose.msra.mxu0 0.0
    %253 = vmatprep.subr.mxu0 0.0
    %254 = vmatpush1.xpose.msra.mxu0 0.0
    %255 = vmatprep.subr.mxu0 0.0
    %256 = vmatpush1.xpose.msra.mxu0 0.0
    %257 = vmatprep.subr.mxu0 0.0
    %258 = vmatpush1.xpose.msra.mxu0 0.0
    %259 = vmatprep.subr.mxu0 0.0
    %260 = vmatpush1.xpose.msra.mxu0 0.0
    %261 = vmatprep.subr.mxu0 0.0
    %262 = vmatpush1.xpose.msra.mxu0 0.0
    %263 = vmatprep.subr.mxu0 0.0
    %264 = vmatpush1.xpose.msra.mxu0 0.0
    %265 = vmatprep.subr.mxu0 0.0
    %266 = vmatpush1.xpose.msra.mxu0 0.0
    %267 = vmatprep.subr.mxu0 0.0
    %268 = vmatpush1.xpose.msra.mxu0 0.0
    %269 = vmatprep.subr.mxu0 0.0
    %270 = vmatpush1.xpose.msra.mxu0 0.0
    %271 = vmatprep.subr.mxu0 0.0
    %272 = vmatpush1.xpose.msra.mxu0 0.0
    %273 = vmatprep.subr.mxu0 0.0
    %274 = vmatpush1.xpose.msra.mxu0 0.0
    %275 = vmatprep.subr.mxu0 0.0
    %276 = vmatpush1.xpose.msra.mxu0 0.0
    %277 = vmatprep.subr.mxu0 0.0
    %278 = vmatpush1.xpose.msra.mxu0 0.0
    %279 = vmatprep.subr.mxu0 0.0
    %280 = vmatpush1.xpose.msra.mxu0 0.0
    %281 = vmatprep.subr.mxu0 0.0
    %282 = vmatpush1.xpose.msra.mxu0 0.0
    %283 = vmatprep.subr.mxu0 0.0
    %284 = vmatpush1.xpose.msra.mxu0 0.0
    %285 = vmatprep.subr.mxu0 0.0
    %286 = vmatpush1.xpose.msra.mxu0 0.0
    %287 = vmatprep.subr.mxu0 0.0
    %288 = vmatpush1.xpose.msra.mxu0 0.0
    %289 = vmatprep.subr.mxu0 0.0
    %290 = vmatpush1.xpose.msra.mxu0 0.0
    %291 = vmatprep.subr.mxu0 0.0
    %292 = vmatpush1.xpose.msra.mxu0 0.0
    %293 = vmatprep.subr.mxu0 0.0
    %294 = vmatpush1.xpose.msra.mxu0 0.0
    %295 = vmatprep.subr.mxu0 0.0
    %296 = vmatpush1.xpose.msra.mxu0 0.0
    %297 = vmatprep.subr.mxu0 0.0
    %298 = vmatpush1.xpose.msra.mxu0 0.0
    %299 = vmatprep.subr.mxu0 0.0
    %300 = vmatpush1.xpose.msra.mxu0 0.0
    %301 = vmatprep.subr.mxu0 0.0
    %302 = vmatpush1.xpose.msra.mxu0 0.0
    %303 = vmatprep.subr.mxu0 0.0
    %304 = vmatpush1.xpose.msra.mxu0 0.0
    %305 = vmatprep.mubr.f32.mxu0 0.0
    %306 = vmatmul.mubr.f32.gmra.mrb[0].mxu0 %v237
    %v307 = vpop.f32.mrb[0].mxu0
    %v308 = vadd.f32 0.0, %v307
    %v309 = vpop.f32.mrb[0].mxu0
    %310 = vdwg.mxu0
    %v311 = vmul.f32 %v308, 0.25
    %v312 = vlaneseq
    %v313 = vshrl.u32 %v312, 7
    %v314 = vsub.s32 2, %v313
    %v315 = vrot.slane %v51, %v314
    %v316 = vadd.f32 %v311, %v315
    %vm317 = vcmask 64512
    %v318 = vsel %vm317, %v316, -inf
    %319 = vmax.xlane.f32.xlu0 %v318
    %v320 = vpop.xlane.xlu0 %319
    %v321 = vsub.f32 %v316, %v320
    %v322 = vmul.f32 %v321, 1.442695
    %v323 = vpow.pop %v322
    %v324 = vsel %vm317, %v323, 0.0
    %325 = vadd.xlane.f32.xlu0 %v324
    %v326 = vpop.xlane.xlu0 %325
    %v327 = vrcp.pop %v326
    %v328 = vmul.f32 %v323, %v327
    %329 = vrot.lane.b32.xlu0 %v230, 64
    %v330 = vpop.permute.xlu0 %329
    %v333 = vsel %vm317, %v328, 0
    %335 = vmatprep.subr.mxu0 0.0
    %336 = vmatpush1.msra.mxu0 %v330
    %337 = vmatprep.subr.mxu0 0.0
    %338 = vmatpush1.msra.mxu0 0.0
    %339 = vmatprep.subr.mxu0 0.0
    %340 = vmatpush1.msra.mxu0 0.0
    %341 = vmatprep.subr.mxu0 0.0
    %342 = vmatpush1.msra.mxu0 0.0
    %343 = vmatprep.subr.mxu0 0.0
    %344 = vmatpush1.msra.mxu0 0.0
    %345 = vmatprep.subr.mxu0 0.0
    %346 = vmatpush1.msra.mxu0 0.0
    %347 = vmatprep.subr.mxu0 0.0
    %348 = vmatpush1.msra.mxu0 0.0
    %349 = vmatprep.subr.mxu0 0.0
    %350 = vmatpush1.msra.mxu0 0.0
    %351 = vmatprep.subr.mxu0 0.0
    %352 = vmatpush1.msra.mxu0 0.0
    %353 = vmatprep.subr.mxu0 0.0
    %354 = vmatpush1.msra.mxu0 0.0
    %355 = vmatprep.subr.mxu0 0.0
    %356 = vmatpush1.msra.mxu0 0.0
    %357 = vmatprep.subr.mxu0 0.0
    %358 = vmatpush1.msra.mxu0 0.0
    %359 = vmatprep.subr.mxu0 0.0
    %360 = vmatpush1.msra.mxu0 0.0
    %361 = vmatprep.subr.mxu0 0.0
    %362 = vmatpush1.msra.mxu0 0.0
    %363 = vmatprep.subr.mxu0 0.0
    %364 = vmatpush1.msra.mxu0 0.0
    %365 = vmatprep.subr.mxu0 0.0
    %366 = vmatpush1.msra.mxu0 0.0
    %367 = vmatprep.subr.mxu0 0.0
    %368 = vmatpush1.msra.mxu0 0.0
    %369 = vmatprep.subr.mxu0 0.0
    %370 = vmatpush1.msra.mxu0 0.0
    %371 = vmatprep.subr.mxu0 0.0
    %372 = vmatpush1.msra.mxu0 0.0
    %373 = vmatprep.subr.mxu0 0.0
    %374 = vmatpush1.msra.mxu0 0.0
    %375 = vmatprep.subr.mxu0 0.0
    %376 = vmatpush1.msra.mxu0 0.0
    %377 = vmatprep.subr.mxu0 0.0
    %378 = vmatpush1.msra.mxu0 0.0
    %379 = vmatprep.subr.mxu0 0.0
    %380 = vmatpush1.msra.mxu0 0.0
    %381 = vmatprep.subr.mxu0 0.0
    %382 = vmatpush1.msra.mxu0 0.0
    %383 = vmatprep.subr.mxu0 0.0
    %384 = vmatpush1.msra.mxu0 0.0
    %385 = vmatprep.subr.mxu0 0.0
    %386 = vmatpush1.msra.mxu0 0.0
    %387 = vmatprep.subr.mxu0 0.0
    %388 = vmatpush1.msra.mxu0 0.0
    %389 = vmatprep.subr.mxu0 0.0
    %390 = vmatpush1.msra.mxu0 0.0
    %391 = vmatprep.subr.mxu0 0.0
    %392 = vmatpush1.msra.mxu0 0.0
    %393 = vmatprep.subr.mxu0 0.0
    %394 = vmatpush1.msra.mxu0 0.0
    %395 = vmatprep.subr.mxu0 0.0
    %396 = vmatpush1.msra.mxu0 0.0
    %397 = vmatprep.subr.mxu0 0.0
    %398 = vmatpush1.msra.mxu0 0.0
    %399 = vmatprep.mubr.f32.mxu0 0.0
    %400 = vmatmul.mubr.f32.gmra.mrb[0].mxu0 %v333
    %v401 = vpop.f32.mrb[0].mxu0
    %v402 = vadd.f32 0.0, %v401
    %v403 = vpop.f32.mrb[0].mxu0
    %404 = vdwg.mxu0
    %405 = vrot.lane.b32.xlu0 %v230, 112
    %v406 = vpop.permute.xlu0 %405
    %407 = vrot.lane.b32.xlu0 %v230, 80
    %v408 = vpop.permute.xlu0 %407
    %v409 = vsel %vm236, %v406, 0
    %v411 = vsel %vm236, %v408, 0
    %413 = vmatprep.subr.mxu0 0.0
    %414 = vmatpush1.xpose.msra.mxu0 %v411
    %415 = vmatprep.subr.mxu0 0.0
    %416 = vmatpush1.xpose.msra.mxu0 0.0
    %417 = vmatprep.subr.mxu0 0.0
    %418 = vmatpush1.xpose.msra.mxu0 0.0
    %419 = vmatprep.subr.mxu0 0.0
    %420 = vmatpush1.xpose.msra.mxu0 0.0
    %421 = vmatprep.subr.mxu0 0.0
    %422 = vmatpush1.xpose.msra.mxu0 0.0
    %423 = vmatprep.subr.mxu0 0.0
    %424 = vmatpush1.xpose.msra.mxu0 0.0
    %425 = vmatprep.subr.mxu0 0.0
    %426 = vmatpush1.xpose.msra.mxu0 0.0
    %427 = vmatprep.subr.mxu0 0.0
    %428 = vmatpush1.xpose.msra.mxu0 0.0
    %429 = vmatprep.subr.mxu0 0.0
    %430 = vmatpush1.xpose.msra.mxu0 0.0
    %431 = vmatprep.subr.mxu0 0.0
    %432 = vmatpush1.xpose.msra.mxu0 0.0
    %433 = vmatprep.subr.mxu0 0.0
    %434 = vmatpush1.xpose.msra.mxu0 0.0
    %435 = vmatprep.subr.mxu0 0.0
    %436 = vmatpush1.xpose.msra.mxu0 0.0
    %437 = vmatprep.subr.mxu0 0.0
    %438 = vmatpush1.xpose.msra.mxu0 0.0
    %439 = vmatprep.subr.mxu0 0.0
    %440 = vmatpush1.xpose.msra.mxu0 0.0
    %441 = vmatprep.subr.mxu0 0.0
    %442 = vmatpush1.xpose.msra.mxu0 0.0
    %443 = vmatprep.subr.mxu0 0.0
    %444 = vmatpush1.xpose.msra.mxu0 0.0
    %445 = vmatprep.subr.mxu0 0.0
    %446 = vmatpush1.xpose.msra.mxu0 0.0
    %447 = vmatprep.subr.mxu0 0.0
    %448 = vmatpush1.xpose.msra.mxu0 0.0
    %449 = vmatprep.subr.mxu0 0.0
    %450 = vmatpush1.xpose.msra.mxu0 0.0
    %451 = vmatprep.subr.mxu0 0.0
    %452 = vmatpush1.xpose.msra.mxu0 0.0
    %453 = vmatprep.subr.mxu0 0.0
    %454 = vmatpush1.xpose.msra.mxu0 0.0
    %455 = vmatprep.subr.mxu0 0.0
    %456 = vmatpush1.xpose.msra.mxu0 0.0
    %457 = vmatprep.subr.mxu0 0.0
    %458 = vmatpush1.xpose.msra.mxu0 0.0
    %459 = vmatprep.subr.mxu0 0.0
    %460 = vmatpush1.xpose.msra.mxu0 0.0
    %461 = vmatprep.subr.mxu0 0.0
    %462 = vmatpush1.xpose.msra.mxu0 0.0
    %463 = vmatprep.subr.mxu0 0.0
    %464 = vmatpush1.xpose.msra.mxu0 0.0
    %465 = vmatprep.subr.mxu0 0.0
    %466 = vmatpush1.xpose.msra.mxu0 0.0
    %467 = vmatprep.subr.mxu0 0.0
    %468 = vmatpush1.xpose.msra.mxu0 0.0
    %469 = vmatprep.subr.mxu0 0.0
    %470 = vmatpush1.xpose.msra.mxu0 0.0
    %471 = vmatprep.subr.mxu0 0.0
    %472 = vmatpush1.xpose.msra.mxu0 0.0
    %473 = vmatprep.subr.mxu0 0.0
    %474 = vmatpush1.xpose.msra.mxu0 0.0
    %475 = vmatprep.subr.mxu0 0.0
    %476 = vmatpush1.xpose.msra.mxu0 0.0
    %477 = vmatprep.mubr.f32.mxu0 0.0
    %478 = vmatmul.mubr.f32.gmra.mrb[0].mxu0 %v409
    %v479 = vpop.f32.mrb[0].mxu0
    %v480 = vadd.f32 0.0, %v479
    %v481 = vpop.f32.mrb[0].mxu0
    %482 = vdwg.mxu0
    %v483 = vmul.f32 %v480, 0.25
    %v484 = vadd.f32 %v483, %v315
    %v485 = vsel %vm317, %v484, -inf
    %486 = vmax.xlane.f32.xlu0 %v485
    %v487 = vpop.xlane.xlu0 %486
    %v488 = vsub.f32 %v484, %v487
    %v489 = vmul.f32 %v488, 1.442695
    %v490 = vpow.pop %v489
    %v491 = vsel %vm317, %v490, 0.0
    %492 = vadd.xlane.f32.xlu0 %v491
    %v493 = vpop.xlane.xlu0 %492
    %v494 = vrcp.pop %v493
    %v495 = vmul.f32 %v490, %v494
    %496 = vrot.lane.b32.xlu0 %v230, 48
    %v497 = vpop.permute.xlu0 %496
    %v500 = vsel %vm317, %v495, 0
    %502 = vmatprep.subr.mxu0 0.0
    %503 = vmatpush1.msra.mxu0 %v497
    %504 = vmatprep.subr.mxu0 0.0
    %505 = vmatpush1.msra.mxu0 0.0
    %506 = vmatprep.subr.mxu0 0.0
    %507 = vmatpush1.msra.mxu0 0.0
    %508 = vmatprep.subr.mxu0 0.0
    %509 = vmatpush1.msra.mxu0 0.0
    %510 = vmatprep.subr.mxu0 0.0
    %511 = vmatpush1.msra.mxu0 0.0
    %512 = vmatprep.subr.mxu0 0.0
    %513 = vmatpush1.msra.mxu0 0.0
    %514 = vmatprep.subr.mxu0 0.0
    %515 = vmatpush1.msra.mxu0 0.0
    %516 = vmatprep.subr.mxu0 0.0
    %517 = vmatpush1.msra.mxu0 0.0
    %518 = vmatprep.subr.mxu0 0.0
    %519 = vmatpush1.msra.mxu0 0.0
    %520 = vmatprep.subr.mxu0 0.0
    %521 = vmatpush1.msra.mxu0 0.0
    %522 = vmatprep.subr.mxu0 0.0
    %523 = vmatpush1.msra.mxu0 0.0
    %524 = vmatprep.subr.mxu0 0.0
    %525 = vmatpush1.msra.mxu0 0.0
    %526 = vmatprep.subr.mxu0 0.0
    %527 = vmatpush1.msra.mxu0 0.0
    %528 = vmatprep.subr.mxu0 0.0
    %529 = vmatpush1.msra.mxu0 0.0
    %530 = vmatprep.subr.mxu0 0.0
    %531 = vmatpush1.msra.mxu0 0.0
    %532 = vmatprep.subr.mxu0 0.0
    %533 = vmatpush1.msra.mxu0 0.0
    %534 = vmatprep.subr.mxu0 0.0
    %535 = vmatpush1.msra.mxu0 0.0
    %536 = vmatprep.subr.mxu0 0.0
    %537 = vmatpush1.msra.mxu0 0.0
    %538 = vmatprep.subr.mxu0 0.0
    %539 = vmatpush1.msra.mxu0 0.0
    %540 = vmatprep.subr.mxu0 0.0
    %541 = vmatpush1.msra.mxu0 0.0
    %542 = vmatprep.subr.mxu0 0.0
    %543 = vmatpush1.msra.mxu0 0.0
    %544 = vmatprep.subr.mxu0 0.0
    %545 = vmatpush1.msra.mxu0 0.0
    %546 = vmatprep.subr.mxu0 0.0
    %547 = vmatpush1.msra.mxu0 0.0
    %548 = vmatprep.subr.mxu0 0.0
    %549 = vmatpush1.msra.mxu0 0.0
    %550 = vmatprep.subr.mxu0 0.0
    %551 = vmatpush1.msra.mxu0 0.0
    %552 = vmatprep.subr.mxu0 0.0
    %553 = vmatpush1.msra.mxu0 0.0
    %554 = vmatprep.subr.mxu0 0.0
    %555 = vmatpush1.msra.mxu0 0.0
    %556 = vmatprep.subr.mxu0 0.0
    %557 = vmatpush1.msra.mxu0 0.0
    %558 = vmatprep.subr.mxu0 0.0
    %559 = vmatpush1.msra.mxu0 0.0
    %560 = vmatprep.subr.mxu0 0.0
    %561 = vmatpush1.msra.mxu0 0.0
    %562 = vmatprep.subr.mxu0 0.0
    %563 = vmatpush1.msra.mxu0 0.0
    %564 = vmatprep.subr.mxu0 0.0
    %565 = vmatpush1.msra.mxu0 0.0
    %566 = vmatprep.mubr.f32.mxu0 0.0
    %567 = vmatmul.mubr.f32.gmra.mrb[0].mxu0 %v500
    %v568 = vpop.f32.mrb[0].mxu0
    %v569 = vadd.f32 0.0, %v568
    %v570 = vpop.f32.mrb[0].mxu0
    %571 = vdwg.mxu0
    %573 = vrot.lane.b32.xlu0 %v569, 16
    %v574 = vpop.permute.xlu0 %573
    %v576 = vsel %vm236, %v402, %v574
    %v577 = vld [vmem:[%s5] sm:$0xff]
    %v578 = vld [vmem:[%s5 + $0x8] sm:$0xff]
    %v579 = vld [vmem:[%s5 + $0x10] sm:$0xff]
    %v580 = vld [vmem:[%s5 + $0x18] sm:$0xff]
    %v581 = vlaneseq
    %v582 = vshrl.u32 %v581, 7
    %v583 = vsub.s32 1, %v582
    %v584 = vrot.slane %v151, %v583
    %v586 = vsel %vm126, %v576, 0
    %588 = vmatprep.subr.mxu0 0.0
    %589 = vmatpush1.msra.mxu0 %v577
    %590 = vmatprep.subr.mxu0 0.0
    %591 = vmatpush1.msra.mxu0 %v578
    %592 = vmatprep.subr.mxu0 0.0
    %593 = vmatpush1.msra.mxu0 %v579
    %594 = vmatprep.subr.mxu0 0.0
    %595 = vmatpush1.msra.mxu0 %v580
    %596 = vmatprep.subr.mxu0 0.0
    %597 = vmatpush1.msra.mxu0 0.0
    %598 = vmatprep.subr.mxu0 0.0
    %599 = vmatpush1.msra.mxu0 0.0
    %600 = vmatprep.subr.mxu0 0.0
    %601 = vmatpush1.msra.mxu0 0.0
    %602 = vmatprep.subr.mxu0 0.0
    %603 = vmatpush1.msra.mxu0 0.0
    %604 = vmatprep.subr.mxu0 0.0
    %605 = vmatpush1.msra.mxu0 0.0
    %606 = vmatprep.subr.mxu0 0.0
    %607 = vmatpush1.msra.mxu0 0.0
    %608 = vmatprep.subr.mxu0 0.0
    %609 = vmatpush1.msra.mxu0 0.0
    %610 = vmatprep.subr.mxu0 0.0
    %611 = vmatpush1.msra.mxu0 0.0
    %612 = vmatprep.subr.mxu0 0.0
    %613 = vmatpush1.msra.mxu0 0.0
    %614 = vmatprep.subr.mxu0 0.0
    %615 = vmatpush1.msra.mxu0 0.0
    %616 = vmatprep.subr.mxu0 0.0
    %617 = vmatpush1.msra.mxu0 0.0
    %618 = vmatprep.subr.mxu0 0.0
    %619 = vmatpush1.msra.mxu0 0.0
    %620 = vmatprep.subr.mxu0 0.0
    %621 = vmatpush1.msra.mxu0 0.0
    %622 = vmatprep.subr.mxu0 0.0
    %623 = vmatpush1.msra.mxu0 0.0
    %624 = vmatprep.subr.mxu0 0.0
    %625 = vmatpush1.msra.mxu0 0.0
    %626 = vmatprep.subr.mxu0 0.0
    %627 = vmatpush1.msra.mxu0 0.0
    %628 = vmatprep.subr.mxu0 0.0
    %629 = vmatpush1.msra.mxu0 0.0
    %630 = vmatprep.subr.mxu0 0.0
    %631 = vmatpush1.msra.mxu0 0.0
    %632 = vmatprep.subr.mxu0 0.0
    %633 = vmatpush1.msra.mxu0 0.0
    %634 = vmatprep.subr.mxu0 0.0
    %635 = vmatpush1.msra.mxu0 0.0
    %636 = vmatprep.subr.mxu0 0.0
    %637 = vmatpush1.msra.mxu0 0.0
    %638 = vmatprep.subr.mxu0 0.0
    %639 = vmatpush1.msra.mxu0 0.0
    %640 = vmatprep.subr.mxu0 0.0
    %641 = vmatpush1.msra.mxu0 0.0
    %642 = vmatprep.subr.mxu0 0.0
    %643 = vmatpush1.msra.mxu0 0.0
    %644 = vmatprep.subr.mxu0 0.0
    %645 = vmatpush1.msra.mxu0 0.0
    %646 = vmatprep.subr.mxu0 0.0
    %647 = vmatpush1.msra.mxu0 0.0
    %648 = vmatprep.subr.mxu0 0.0
    %649 = vmatpush1.msra.mxu0 0.0
    %650 = vmatprep.subr.mxu0 0.0
    %651 = vmatpush1.msra.mxu0 0.0
    %652 = vmatprep.mubr.f32.mxu0 0.0
    %653 = vmatmul.mubr.f32.gmra.mrb[0].mxu0 %v586
    %v654 = vpop.f32.mrb[0].mxu0
    %v655 = vadd.f32 %v584, %v654
    %v656 = vpop.f32.mrb[0].mxu0
    %657 = vdwg.mxu0
    %v658 = vadd.f32 %v150, %v655
    %v659 = vsel %vm126, %v658, 0.0
    %660 = vadd.xlane.f32.xlu0 %v659
    %v661 = vpop.xlane.xlu0 %660
    %v662 = vmul.f32 %v661, %v130
    %v663 = vsub.f32 %v658, %v662
    %v664 = vmul.f32 %v663, %v663
    %v665 = vsel %vm126, %v664, 0.0
    %666 = vadd.xlane.f32.xlu0 %v665
    %v667 = vpop.xlane.xlu0 %666
    %v668 = vmul.f32 %v667, %v130
    %v669 = vadd.f32 %v668, 1e-12
    %v670 = vrsqrt.pop %v669
    %v671 = vmul.f32 %v663, %v670
    %v672 = vlaneseq
    %v673 = vshrl.u32 %v672, 7
    %v674 = vsub.s32 2, %v673
    %v675 = vrot.slane %v151, %v674
    %v676 = vmul.f32 %v671, %v675
    %v677 = vlaneseq
    %v678 = vshrl.u32 %v677, 7
    %v679 = vsub.s32 3, %v678
    %v680 = vrot.slane %v151, %v679
    %v681 = vadd.f32 %v676, %v680
    %v682 = vld [vmem:[%s6] sm:$0xff]
    %v683 = vld [vmem:[%s6 + $0x8] sm:$0xff]
    %v684 = vld [vmem:[%s6 + $0x10] sm:$0xff]
    %v685 = vld [vmem:[%s6 + $0x18] sm:$0xff]
    %v686 = vlaneseq
    %v687 = vshrl.u32 %v686, 7
    %v688 = vsub.s32 4, %v687
    %v689 = vrot.slane %v151, %v688
    %v691 = vsel %vm126, %v681, 0
    %693 = vmatprep.subr.mxu0 0.0
    %694 = vmatpush1.msra.mxu0 %v682
    %695 = vmatprep.subr.mxu0 0.0
    %696 = vmatpush1.msra.mxu0 %v683
    %697 = vmatprep.subr.mxu0 0.0
    %698 = vmatpush1.msra.mxu0 %v684
    %699 = vmatprep.subr.mxu0 0.0
    %700 = vmatpush1.msra.mxu0 %v685
    %701 = vmatprep.subr.mxu0 0.0
    %702 = vmatpush1.msra.mxu0 0.0
    %703 = vmatprep.subr.mxu0 0.0
    %704 = vmatpush1.msra.mxu0 0.0
    %705 = vmatprep.subr.mxu0 0.0
    %706 = vmatpush1.msra.mxu0 0.0
    %707 = vmatprep.subr.mxu0 0.0
    %708 = vmatpush1.msra.mxu0 0.0
    %709 = vmatprep.subr.mxu0 0.0
    %710 = vmatpush1.msra.mxu0 0.0
    %711 = vmatprep.subr.mxu0 0.0
    %712 = vmatpush1.msra.mxu0 0.0
    %713 = vmatprep.subr.mxu0 0.0
    %714 = vmatpush1.msra.mxu0 0.0
    %715 = vmatprep.subr.mxu0 0.0
    %716 = vmatpush1.msra.mxu0 0.0
    %717 = vmatprep.subr.mxu0 0.0
    %718 = vmatpush1.msra.mxu0 0.0
    %719 = vmatprep.subr.mxu0 0.0
    %720 = vmatpush1.msra.mxu0 0.0
    %721 = vmatprep.subr.mxu0 0.0
    %722 = vmatpush1.msra.mxu0 0.0
    %723 = vmatprep.subr.mxu0 0.0
    %724 = vmatpush1.msra.mxu0 0.0
    %725 = vmatprep.subr.mxu0 0.0
    %726 = vmatpush1.msra.mxu0 0.0
    %727 = vmatprep.subr.mxu0 0.0
    %728 = vmatpush1.msra.mxu0 0.0
    %729 = vmatprep.subr.mxu0 0.0
    %730 = vmatpush1.msra.mxu0 0.0
    %731 = vmatprep.subr.mxu0 0.0
    %732 = vmatpush1.msra.mxu0 0.0
    %733 = vmatprep.subr.mxu0 0.0
    %734 = vmatpush1.msra.mxu0 0.0
    %735 = vmatprep.subr.mxu0 0.0
    %736 = vmatpush1.msra.mxu0 0.0
    %737 = vmatprep.subr.mxu0 0.0
    %738 = vmatpush1.msra.mxu0 0.0
    %739 = vmatprep.subr.mxu0 0.0
    %740 = vmatpush1.msra.mxu0 0.0
    %741 = vmatprep.subr.mxu0 0.0
    %742 = vmatpush1.msra.mxu0 0.0
    %743 = vmatprep.subr.mxu0 0.0
    %744 = vmatpush1.msra.mxu0 0.0
    %745 = vmatprep.subr.mxu0 0.0
    %746 = vmatpush1.msra.mxu0 0.0
    %747 = vmatprep.subr.mxu0 0.0
    %748 = vmatpush1.msra.mxu0 0.0
    %749 = vmatprep.subr.mxu0 0.0
    %750 = vmatpush1.msra.mxu0 0.0
    %751 = vmatprep.subr.mxu0 0.0
    %752 = vmatpush1.msra.mxu0 0.0
    %753 = vmatprep.subr.mxu0 0.0
    %754 = vmatpush1.msra.mxu0 0.0
    %755 = vmatprep.subr.mxu0 0.0
    %756 = vmatpush1.msra.mxu0 0.0
    %757 = vmatprep.mubr.f32.mxu0 0.0
    %758 = vmatmul.mubr.f32.gmra.mrb[0].mxu0 %v691
    %v759 = vpop.f32.mrb[0].mxu0
    %v760 = vadd.f32 %v689, %v759
    %v761 = vpop.f32.mrb[0].mxu0
    %762 = vdwg.mxu0
    %v763 = vmul.f32 %v760, %v760
    %v764 = vmul.f32 %v760, %v763
    %v765 = vmul.f32 %v764, 0.044715
    %v766 = vadd.f32 %v760, %v765
    %v767 = vmul.f32 %v766, 0.7978846
    %v768 = vtanh.pop %v767
    %v769 = vadd.f32 %v768, 1.0
    %v770 = vmul.f32 %v769, 0.5
    %v771 = vmul.f32 %v760, %v770
    %v772 = vld [vmem:[%s7] sm:$0xff]
    %v773 = vld [vmem:[%s7 + $0x8] sm:$0xff]
    %v774 = vld [vmem:[%s7 + $0x10] sm:$0xff]
    %v775 = vld [vmem:[%s7 + $0x18] sm:$0xff]
    %v776 = vld [vmem:[%s7 + $0x20] sm:$0xff]
    %v777 = vld [vmem:[%s7 + $0x28] sm:$0xff]
    %v778 = vld [vmem:[%s7 + $0x30] sm:$0xff]
    %v779 = vld [vmem:[%s7 + $0x38] sm:$0xff]
    %v780 = vlaneseq
    %v781 = vshrl.u32 %v780, 7
    %v782 = vsub.s32 5, %v781
    %v783 = vrot.slane %v151, %v782
    %v785 = vsel %vm52, %v771, 0
    %787 = vmatprep.subr.mxu0 0.0
    %788 = vmatpush1.msra.mxu0 %v772
    %789 = vmatprep.subr.mxu0 0.0
    %790 = vmatpush1.msra.mxu0 %v773
    %791 = vmatprep.subr.mxu0 0.0
    %792 = vmatpush1.msra.mxu0 %v774
    %793 = vmatprep.subr.mxu0 0.0
    %794 = vmatpush1.msra.mxu0 %v775
    %795 = vmatprep.subr.mxu0 0.0
    %796 = vmatpush1.msra.mxu0 %v776
    %797 = vmatprep.subr.mxu0 0.0
    %798 = vmatpush1.msra.mxu0 %v777
    %799 = vmatprep.subr.mxu0 0.0
    %800 = vmatpush1.msra.mxu0 %v778
    %801 = vmatprep.subr.mxu0 0.0
    %802 = vmatpush1.msra.mxu0 %v779
    %803 = vmatprep.subr.mxu0 0.0
    %804 = vmatpush1.msra.mxu0 0.0
    %805 = vmatprep.subr.mxu0 0.0
    %806 = vmatpush1.msra.mxu0 0.0
    %807 = vmatprep.subr.mxu0 0.0
    %808 = vmatpush1.msra.mxu0 0.0
    %809 = vmatprep.subr.mxu0 0.0
    %810 = vmatpush1.msra.mxu0 0.0
    %811 = vmatprep.subr.mxu0 0.0
    %812 = vmatpush1.msra.mxu0 0.0
    %813 = vmatprep.subr.mxu0 0.0
    %814 = vmatpush1.msra.mxu0 0.0
    %815 = vmatprep.subr.mxu0 0.0
    %816 = vmatpush1.msra.mxu0 0.0
    %817 = vmatprep.subr.mxu0 0.0
    %818 = vmatpush1.msra.mxu0 0.0
    %819 = vmatprep.subr.mxu0 0.0
    %820 = vmatpush1.msra.mxu0 0.0
    %821 = vmatprep.subr.mxu0 0.0
    %822 = vmatpush1.msra.mxu0 0.0
    %823 = vmatprep.subr.mxu0 0.0
    %824 = vmatpush1.msra.mxu0 0.0
    %825 = vmatprep.subr.mxu0 0.0
    %826 = vmatpush1.msra.mxu0 0.0
    %827 = vmatprep.subr.mxu0 0.0
    %828 = vmatpush1.msra.mxu0 0.0
    %829 = vmatprep.subr.mxu0 0.0
    %830 = vmatpush1.msra.mxu0 0.0
    %831 = vmatprep.subr.mxu0 0.0
    %832 = vmatpush1.msra.mxu0 0.0
    %833 = vmatprep.subr.mxu0 0.0
    %834 = vmatpush1.msra.mxu0 0.0
    %835 = vmatprep.subr.mxu0 0.0
    %836 = vmatpush1.msra.mxu0 0.0
    %837 = vmatprep.subr.mxu0 0.0
    %838 = vmatpush1.msra.mxu0 0.0
    %839 = vmatprep.subr.mxu0 0.0
    %840 = vmatpush1.msra.mxu0 0.0
    %841 = vmatprep.subr.mxu0 0.0
    %842 = vmatpush1.msra.mxu0 0.0
    %843 = vmatprep.subr.mxu0 0.0
    %844 = vmatpush1.msra.mxu0 0.0
    %845 = vmatprep.subr.mxu0 0.0
    %846 = vmatpush1.msra.mxu0 0.0
    %847 = vmatprep.subr.mxu0 0.0
    %848 = vmatpush1.msra.mxu0 0.0
    %849 = vmatprep.subr.mxu0 0.0
    %850 = vmatpush1.msra.mxu0 0.0
    %851 = vmatprep.mubr.f32.mxu0 0.0
    %852 = vmatmul.mubr.f32.gmra.mrb[0].mxu0 %v785
    %v853 = vpop.f32.mrb[0].mxu0
    %v854 = vadd.f32 %v783, %v853
    %v855 = vpop.f32.mrb[0].mxu0
    %856 = vdwg.mxu0
    %v857 = vadd.f32 %v681, %v854
    %v858 = vsel %vm126, %v857, 0.0
    %859 = vadd.xlane.f32.xlu0 %v858
    %v860 = vpop.xlane.xlu0 %859
    %v861 = vmul.f32 %v860, %v130
    %v862 = vsub.f32 %v857, %v861
    %v863 = vmul.f32 %v862, %v862
    %v864 = vsel %vm126, %v863, 0.0
    %865 = vadd.xlane.f32.xlu0 %v864
    %v866 = vpop.xlane.xlu0 %865
    %v867 = vmul.f32 %v866, %v130
    %v868 = vadd.f32 %v867, 1e-12
    %v869 = vrsqrt.pop %v868
    %v870 = vmul.f32 %v862, %v869
    %v871 = vlaneseq
    %v872 = vshrl.u32 %v871, 7
    %v873 = vsub.s32 6, %v872
    %v874 = vrot.slane %v151, %v873
    %v875 = vmul.f32 %v870, %v874
    %v876 = vlaneseq
    %v877 = vshrl.u32 %v876, 7
    %v878 = vsub.s32 7, %v877
    %v879 = vrot.slane %v151, %v878
    %v880 = vadd.f32 %v875, %v879
    %s881 = scalar_lea.vmem %s8, 8
    %v882 = vld [vmem:[%s881] sm:$0xff]
    %s883 = scalar_lea.vmem %s4, 32
    %v884 = vld [vmem:[%s883] sm:$0xff]
    %v885 = vld [vmem:[%s883 + $0x8] sm:$0xff]
    %v886 = vld [vmem:[%s883 + $0x10] sm:$0xff]
    %v887 = vld [vmem:[%s883 + $0x18] sm:$0xff]
    %v888 = vlaneseq
    %v889 = vshrl.u32 %v888, 7
    %v890 = vsub.s32 0, %v889
    %v891 = vrot.slane %v882, %v890
    %v893 = vsel %vm126, %v880, 0
    %895 = vmatprep.subr.mxu0 0.0
    %896 = vmatpush1.msra.mxu0 %v884
    %897 = vmatprep.subr.mxu0 0.0
    %898 = vmatpush1.msra.mxu0 %v885
    %899 = vmatprep.subr.mxu0 0.0
    %900 = vmatpush1.msra.mxu0 %v886
    %901 = vmatprep.subr.mxu0 0.0
    %902 = vmatpush1.msra.mxu0 %v887
    %903 = vmatprep.subr.mxu0 0.0
    %904 = vmatpush1.msra.mxu0 0.0
    %905 = vmatprep.subr.mxu0 0.0
    %906 = vmatpush1.msra.mxu0 0.0
    %907 = vmatprep.subr.mxu0 0.0
    %908 = vmatpush1.msra.mxu0 0.0
    %909 = vmatprep.subr.mxu0 0.0
    %910 = vmatpush1.msra.mxu0 0.0
    %911 = vmatprep.subr.mxu0 0.0
    %912 = vmatpush1.msra.mxu0 0.0
    %913 = vmatprep.subr.mxu0 0.0
    %914 = vmatpush1.msra.mxu0 0.0
    %915 = vmatprep.subr.mxu0 0.0
    %916 = vmatpush1.msra.mxu0 0.0
    %917 = vmatprep.subr.mxu0 0.0
    %918 = vmatpush1.msra.mxu0 0.0
    %919 = vmatprep.subr.mxu0 0.0
    %920 = vmatpush1.msra.mxu0 0.0
    %921 = vmatprep.subr.mxu0 0.0
    %922 = vmatpush1.msra.mxu0 0.0
    %923 = vmatprep.subr.mxu0 0.0
    %924 = vmatpush1.msra.mxu0 0.0
    %925 = vmatprep.subr.mxu0 0.0
    %926 = vmatpush1.msra.mxu0 0.0
    %927 = vmatprep.subr.mxu0 0.0
    %928 = vmatpush1.msra.mxu0 0.0
    %929 = vmatprep.subr.mxu0 0.0
    %930 = vmatpush1.msra.mxu0 0.0
    %931 = vmatprep.subr.mxu0 0.0
    %932 = vmatpush1.msra.mxu0 0.0
    %933 = vmatprep.subr.mxu0 0.0
    %934 = vmatpush1.msra.mxu0 0.0
    %935 = vmatprep.subr.mxu0 0.0
    %936 = vmatpush1.msra.mxu0 0.0
    %937 = vmatprep.subr.mxu0 0.0
    %938 = vmatpush1.msra.mxu0 0.0
    %939 = vmatprep.subr.mxu0 0.0
    %940 = vmatpush1.msra.mxu0 0.0
    %941 = vmatprep.subr.mxu0 0.0
    %942 = vmatpush1.msra.mxu0 0.0
    %943 = vmatprep.subr.mxu0 0.0
    %944 = vmatpush1.msra.mxu0 0.0
    %945 = vmatprep.subr.mxu0 0.0
    %946 = vmatpush1.msra.mxu0 0.0
    %947 = vmatprep.subr.mxu0 0.0
    %948 = vmatpush1.msra.mxu0 0.0
    %949 = vmatprep.subr.mxu0 0.0
    %950 = vmatpush1.msra.mxu0 0.0
    %951 = vmatprep.subr.mxu0 0.0
    %952 = vmatpush1.msra.mxu0 0.0
    %953 = vmatprep.subr.mxu0 0.0
    %954 = vmatpush1.msra.mxu0 0.0
    %955 = vmatprep.subr.mxu0 0.0
    %956 = vmatpush1.msra.mxu0 0.0
    %957 = vmatprep.subr.mxu0 0.0
    %958 = vmatpush1.msra.mxu0 0.0
    %959 = vmatprep.mubr.f32.mxu0 0.0
    %960 = vmatmul.mubr.f32.gmra.mrb[0].mxu0 %v893
    %v961 = vpop.f32.mrb[0].mxu0
    %v962 = vadd.f32 %v891, %v961
    %v963 = vpop.f32.mrb[0].mxu0
    %964 = vdwg.mxu0
    %966 = vrot.lane.b32.xlu0 %v962, 96
    %v967 = vpop.permute.xlu0 %966
    %v968 = vsel %vm236, %v962, 0
    %v970 = vsel %vm236, %v967, 0
    %972 = vmatprep.subr.mxu0 0.0
    %973 = vmatpush1.xpose.msra.mxu0 %v970
    %974 = vmatprep.subr.mxu0 0.0
    %975 = vmatpush1.xpose.msra.mxu0 0.0
    %976 = vmatprep.subr.mxu0 0.0
    %977 = vmatpush1.xpose.msra.mxu0 0.0
    %978 = vmatprep.subr.mxu0 0.0
    %979 = vmatpush1.xpose.msra.mxu0 0.0
    %980 = vmatprep.subr.mxu0 0.0
    %981 = vmatpush1.xpose.msra.mxu0 0.0
    %982 = vmatprep.subr.mxu0 0.0
    %983 = vmatpush1.xpose.msra.mxu0 0.0
    %984 = vmatprep.subr.mxu0 0.0
    %985 = vmatpush1.xpose.msra.mxu0 0.0
    %986 = vmatprep.subr.mxu0 0.0
    %987 = vmatpush1.xpose.msra.mxu0 0.0
    %988 = vmatprep.subr.mxu0 0.0
    %989 = vmatpush1.xpose.msra.mxu0 0.0
    %990 = vmatprep.subr.mxu0 0.0
    %991 = vmatpush1.xpose.msra.mxu0 0.0
    %992 = vmatprep.subr.mxu0 0.0
    %993 = vmatpush1.xpose.msra.mxu0 0.0
    %994 = vmatprep.subr.mxu0 0.0
    %995 = vmatpush1.xpose.msra.mxu0 0.0
    %996 = vmatprep.subr.mxu0 0.0
    %997 = vmatpush1.xpose.msra.mxu0 0.0
    %998 = vmatprep.subr.mxu0 0.0
    %999 = vmatpush1.xpose.msra.mxu0 0.0
    %1000 = vmatprep.subr.mxu0 0.0
    %1001 = vmatpush1.xpose.msra.mxu0 0.0
    %1002 = vmatprep.subr.mxu0 0.0
    %1003 = vmatpush1.xpose.msra.mxu0 0.0
    %1004 = vmatprep.subr.mxu0 0.0
    %1005 = vmatpush1.xpose.msra.mxu0 0.0
    %1006 = vmatprep.subr.mxu0 0.0
    %1007 = vmatpush1.xpose.msra.mxu0 0.0
    %1008 = vmatprep.subr.mxu0 0.0
    %1009 = vmatpush1.xpose.msra.mxu0 0.0
    %1010 = vmatprep.subr.mxu0 0.0
    %1011 = vmatpush1.xpose.msra.mxu0 0.0
    %1012 = vmatprep.subr.mxu0 0.0
    %1013 = vmatpush1.xpose.msra.mxu0 0.0
    %1014 = vmatprep.subr.mxu0 0.0
    %1015 = vmatpush1.xpose.msra.mxu0 0.0
    %1016 = vmatprep.subr.mxu0 0.0
    %1017 = vmatpush1.xpose.msra.mxu0 0.0
    %1018 = vmatprep.subr.mxu0 0.0
    %1019 = vmatpush1.xpose.msra.mxu0 0.0
    %1020 = vmatprep.subr.mxu0 0.0
    %1021 = vmatpush1.xpose.msra.mxu0 0.0
    %1022 = vmatprep.subr.mxu0 0.0
    %1023 = vmatpush1.xpose.msra.mxu0 0.0
    %1024 = vmatprep.subr.mxu0 0.0
    %1025 = vmatpush1.xpose.msra.mxu0 0.0
    %1026 = vmatprep.subr.mxu0 0.0
    %1027 = vmatpush1.xpose.msra.mxu0 0.0
    %1028 = vmatprep.subr.mxu0 0.0
    %1029 = vmatpush1.xpose.msra.mxu0 0.0
    %1030 = vmatprep.subr.mxu0 0.0
    %1031 = vmatpush1.xpose.msra.mxu0 0.0
    %1032 = vmatprep.subr.mxu0 0.0
    %1033 = vmatpush1.xpose.msra.mxu0 0.0
    %1034 = vmatprep.subr.mxu0 0.0
    %1035 = vmatpush1.xpose.msra.mxu0 0.0
    %1036 = vmatprep.mubr.f32.mxu0 0.0
    %1037 = vmatmul.mubr.f32.gmra.mrb[0].mxu0 %v968
    %v1038 = vpop.f32.mrb[0].mxu0
    %v1039 = vadd.f32 0.0, %v1038
    %v1040 = vpop.f32.mrb[0].mxu0
    %1041 = vdwg.mxu0
    %v1042 = vmul.f32 %v1039, 0.25
    %v1043 = vadd.f32 %v1042, %v315
    %v1044 = vsel %vm317, %v1043, -inf
    %1045 = vmax.xlane.f32.xlu0 %v1044
    %v1046 = vpop.xlane.xlu0 %1045
    %v1047 = vsub.f32 %v1043, %v1046
    %v1048 = vmul.f32 %v1047, 1.442695
    %v1049 = vpow.pop %v1048
    %v1050 = vsel %vm317, %v1049, 0.0
    %1051 = vadd.xlane.f32.xlu0 %v1050
    %v1052 = vpop.xlane.xlu0 %1051
    %v1053 = vrcp.pop %v1052
    %v1054 = vmul.f32 %v1049, %v1053
    %1055 = vrot.lane.b32.xlu0 %v962, 64
    %v1056 = vpop.permute.xlu0 %1055
    %v1059 = vsel %vm317, %v1054, 0
    %1061 = vmatprep.subr.mxu0 0.0
    %1062 = vmatpush1.msra.mxu0 %v1056
    %1063 = vmatprep.subr.mxu0 0.0
    %1064 = vmatpush1.msra.mxu0 0.0
    %1065 = vmatprep.subr.mxu0 0.0
    %1066 = vmatpush1.msra.mxu0 0.0
    %1067 = vmatprep.subr.mxu0 0.0
    %1068 = vmatpush1.msra.mxu0 0.0
    %1069 = vmatprep.subr.mxu0 0.0
    %1070 = vmatpush1.msra.mxu0 0.0
    %1071 = vmatprep.subr.mxu0 0.0
    %1072 = vmatpush1.msra.mxu0 0.0
    %1073 = vmatprep.subr.mxu0 0.0
    %1074 = vmatpush1.msra.mxu0 0.0
    %1075 = vmatprep.subr.mxu0 0.0
    %1076 = vmatpush1.msra.mxu0 0.0
    %1077 = vmatprep.subr.mxu0 0.0
    %1078 = vmatpush1.msra.mxu0 0.0
    %1079 = vmatprep.subr.mxu0 0.0
    %1080 = vmatpush1.msra.mxu0 0.0
    %1081 = vmatprep.subr.mxu0 0.0
    %1082 = vmatpush1.msra.mxu0 0.0
    %1083 = vmatprep.subr.mxu0 0.0
    %1084 = vmatpush1.msra.mxu0 0.0
    %1085 = vmatprep.subr.mxu0 0.0
    %1086 = vmatpush1.msra.mxu0 0.0
    %1087 = vmatprep.subr.mxu0 0.0
    %1088 = vmatpush1.msra.mxu0 0.0
    %1089 = vmatprep.subr.mxu0 0.0
    %1090 = vmatpush1.msra.mxu0 0.0
    %1091 = vmatprep.subr.mxu0 0.0
    %1092 = vmatpush1.msra.mxu0 0.0
    %1093 = vmatprep.subr.mxu0 0.0
    %1094 = vmatpush1.msra.mxu0 0.0
    %1095 = vmatprep.subr.mxu0 0.0
    %1096 = vmatpush1.msra.mxu0 0.0
    %1097 = vmatprep.subr.mxu0 0.0
    %1098 = vmatpush1.msra.mxu0 0.0
    %1099 = vmatprep.subr.mxu0 0.0
    %1100 = vmatpush1.msra.mxu0 0.0
    %1101 = vmatprep.subr.mxu0 0.0
    %1102 = vmatpush1.msra.mxu0 0.0
    %1103 = vmatprep.subr.mxu0 0.0
    %1104 = vmatpush1.msra.mxu0 0.0
    %1105 = vmatprep.subr.mxu0 0.0
    %1106 = vmatpush1.msra.mxu0 0.0
    %1107 = vmatprep.subr.mxu0 0.0
    %1108 = vmatpush1.msra.mxu0 0.0
    %1109 = vmatprep.subr.mxu0 0.0
    %1110 = vmatpush1.msra.mxu0 0.0
    %1111 = vmatprep.subr.mxu0 0.0
    %1112 = vmatpush1.msra.mxu0 0.0
    %1113 = vmatprep.subr.mxu0 0.0
    %1114 = vmatpush1.msra.mxu0 0.0
    %1115 = vmatprep.subr.mxu0 0.0
    %1116 = vmatpush1.msra.mxu0 0.0
    %1117 = vmatprep.subr.mxu0 0.0
    %1118 = vmatpush1.msra.mxu0 0.0
    %1119 = vmatprep.subr.mxu0 0.0
    %1120 = vmatpush1.msra.mxu0 0.0
    %1121 = vmatprep.subr.mxu0 0.0
    %1122 = vmatpush1.msra.mxu0 0.0
    %1123 = vmatprep.subr.mxu0 0.0
    %1124 = vmatpush1.msra.mxu0 0.0
    %1125 = vmatprep.mubr.f32.mxu0 0.0
    %1126 = vmatmul.mubr.f32.gmra.mrb[0].mxu0 %v1059
    %v1127 = vpop.f32.mrb[0].mxu0
    %v1128 = vadd.f32 0.0, %v1127
    %v1129 = vpop.f32.mrb[0].mxu0
    %1130 = vdwg.mxu0
    %1131 = vrot.lane.b32.xlu0 %v962, 112
    %v1132 = vpop.permute.xlu0 %1131
    %1133 = vrot.lane.b32.xlu0 %v962, 80
    %v1134 = vpop.permute.xlu0 %1133
    %v1135 = vsel %vm236, %v1132, 0
    %v1137 = vsel %vm236, %v1134, 0
    %1139 = vmatprep.subr.mxu0 0.0
    %1140 = vmatpush1.xpose.msra.mxu0 %v1137
    %1141 = vmatprep.subr.mxu0 0.0
    %1142 = vmatpush1.xpose.msra.mxu0 0.0
    %1143 = vmatprep.subr.mxu0 0.0
    %1144 = vmatpush1.xpose.msra.mxu0 0.0
    %1145 = vmatprep.subr.mxu0 0.0
    %1146 = vmatpush1.xpose.msra.mxu0 0.0
    %1147 = vmatprep.subr.mxu0 0.0
    %1148 = vmatpush1.xpose.msra.mxu0 0.0
    %1149 = vmatprep.subr.mxu0 0.0
    %1150 = vmatpush1.xpose.msra.mxu0 0.0
    %1151 = vmatprep.subr.mxu0 0.0
    %1152 = vmatpush1.xpose.msra.mxu0 0.0
    %1153 = vmatprep.subr.mxu0 0.0
    %1154 = vmatpush1.xpose.msra.mxu0 0.0
    %1155 = vmatprep.subr.mxu0 0.0
    %1156 = vmatpush1.xpose.msra.mxu0 0.0
    %1157 = vmatprep.subr.mxu0 0.0
    %1158 = vmatpush1.xpose.msra.mxu0 0.0
    %1159 = vmatprep.subr.mxu0 0.0
    %1160 = vmatpush1.xpose.msra.mxu0 0.0
    %1161 = vmatprep.subr.mxu0 0.0
    %1162 = vmatpush1.xpose.msra.mxu0 0.0
    %1163 = vmatprep.subr.mxu0 0.0
    %1164 = vmatpush1.xpose.msra.mxu0 0.0
    %1165 = vmatprep.subr.mxu0 0.0
    %1166 = vmatpush1.xpose.msra.mxu0 0.0
    %1167 = vmatprep.subr.mxu0 0.0
    %1168 = vmatpush1.xpose.msra.mxu0 0.0
    %1169 = vmatprep.subr.mxu0 0.0
    %1170 = vmatpush1.xpose.msra.mxu0 0.0
    %1171 = vmatprep.subr.mxu0 0.0
    %1172 = vmatpush1.xpose.msra.mxu0 0.0
    %1173 = vmatprep.subr.mxu0 0.0
    %1174 = vmatpush1.xpose.msra.mxu0 0.0
    %1175 = vmatprep.subr.mxu0 0.0
    %1176 = vmatpush1.xpose.msra.mxu0 0.0
    %1177 = vmatprep.subr.mxu0 0.0
    %1178 = vmatpush1.xpose.msra.mxu0 0.0
    %1179 = vmatprep.subr.mxu0 0.0
    %1180 = vmatpush1.xpose.msra.mxu0 0.0
    %1181 = vmatprep.subr.mxu0 0.0
    %1182 = vmatpush1.xpose.msra.mxu0 0.0
    %1183 = vmatprep.subr.mxu0 0.0
    %1184 = vmatpush1.xpose.msra.mxu0 0.0
    %1185 = vmatprep.subr.mxu0 0.0
    %1186 = vmatpush1.xpose.msra.mxu0 0.0
    %1187 = vmatprep.subr.mxu0 0.0
    %1188 = vmatpush1.xpose.msra.mxu0 0.0
    %1189 = vmatprep.subr.mxu0 0.0
    %1190 = vmatpush1.xpose.msra.mxu0 0.0
    %1191 = vmatprep.subr.mxu0 0.0
    %1192 = vmatpush1.xpose.msra.mxu0 0.0
    %1193 = vmatprep.subr.mxu0 0.0
    %1194 = vmatpush1.xpose.msra.mxu0 0.0
    %1195 = vmatprep.subr.mxu0 0.0
    %1196 = vmatpush1.xpose.msra.mxu0 0.0
    %1197 = vmatprep.subr.mxu0 0.0
    %1198 = vmatpush1.xpose.msra.mxu0 0.0
    %1199 = vmatprep.subr.mxu0 0.0
    %1200 = vmatpush1.xpose.msra.mxu0 0.0
    %1201 = vmatprep.subr.mxu0 0.0
    %1202 = vmatpush1.xpose.msra.mxu0 0.0
    %1203 = vmatprep.mubr.f32.mxu0 0.0
    %1204 = vmatmul.mubr.f32.gmra.mrb[0].mxu0 %v1135
    %v1205 = vpop.f32.mrb[0].mxu0
    %v1206 = vadd.f32 0.0, %v1205
    %v1207 = vpop.f32.mrb[0].mxu0
    %1208 = vdwg.mxu0
    %v1209 = vmul.f32 %v1206, 0.25
    %v1210 = vadd.f32 %v1209, %v315
    %v1211 = vsel %vm317, %v1210, -inf
    %1212 = vmax.xlane.f32.xlu0 %v1211
    %v1213 = vpop.xlane.xlu0 %1212
    %v1214 = vsub.f32 %v1210, %v1213
    %v1215 = vmul.f32 %v1214, 1.442695
    %v1216 = vpow.pop %v1215
    %v1217 = vsel %vm317, %v1216, 0.0
    %1218 = vadd.xlane.f32.xlu0 %v1217
    %v1219 = vpop.xlane.xlu0 %1218
    %v1220 = vrcp.pop %v1219
    %v1221 = vmul.f32 %v1216, %v1220
    %1222 = vrot.lane.b32.xlu0 %v962, 48
    %v1223 = vpop.permute.xlu0 %1222
    %v1226 = vsel %vm317, %v1221, 0
    %1228 = vmatprep.subr.mxu0 0.0
    %1229 = vmatpush1.msra.mxu0 %v1223
    %1230 = vmatprep.subr.mxu0 0.0
    %1231 = vmatpush1.msra.mxu0 0.0
    %1232 = vmatprep.subr.mxu0 0.0
    %1233 = vmatpush1.msra.mxu0 0.0
    %1234 = vmatprep.subr.mxu0 0.0
    %1235 = vmatpush1.msra.mxu0 0.0
    %1236 = vmatprep.subr.mxu0 0.0
    %1237 = vmatpush1.msra.mxu0 0.0
    %1238 = vmatprep.subr.mxu0 0.0
    %1239 = vmatpush1.msra.mxu0 0.0
    %1240 = vmatprep.subr.mxu0 0.0
    %1241 = vmatpush1.msra.mxu0 0.0
    %1242 = vmatprep.subr.mxu0 0.0
    %1243 = vmatpush1.msra.mxu0 0.0
    %1244 = vmatprep.subr.mxu0 0.0
    %1245 = vmatpush1.msra.mxu0 0.0
    %1246 = vmatprep.subr.mxu0 0.0
    %1247 = vmatpush1.msra.mxu0 0.0
    %1248 = vmatprep.subr.mxu0 0.0
    %1249 = vmatpush1.msra.mxu0 0.0
    %1250 = vmatprep.subr.mxu0 0.0
    %1251 = vmatpush1.msra.mxu0 0.0
    %1252 = vmatprep.subr.mxu0 0.0
    %1253 = vmatpush1.msra.mxu0 0.0
    %1254 = vmatprep.subr.mxu0 0.0
    %1255 = vmatpush1.msra.mxu0 0.0
    %1256 = vmatprep.subr.mxu0 0.0
    %1257 = vmatpush1.msra.mxu0 0.0
    %1258 = vmatprep.subr.mxu0 0.0
    %1259 = vmatpush1.msra.mxu0 0.0
    %1260 = vmatprep.subr.mxu0 0.0
    %1261 = vmatpush1.msra.mxu0 0.0
    %1262 = vmatprep.subr.mxu0 0.0
    %1263 = vmatpush1.msra.mxu0 0.0
    %1264 = vmatprep.subr.mxu0 0.0
    %1265 = vmatpush1.msra.mxu0 0.0
    %1266 = vmatprep.subr.mxu0 0.0
    %1267 = vmatpush1.msra.mxu0 0.0
    %1268 = vmatprep.subr.mxu0 0.0
    %1269 = vmatpush1.msra.mxu0 0.0
    %1270 = vmatprep.subr.mxu0 0.0
    %1271 = vmatpush1.msra.mxu0 0.0
    %1272 = vmatprep.subr.mxu0 0.0
    %1273 = vmatpush1.msra.mxu0 0.0
    %1274 = vmatprep.subr.mxu0 0.0
    %1275 = vmatpush1.msra.mxu0 0.0
    %1276 = vmatprep.subr.mxu0 0.0
    %1277 = vmatpush1.msra.mxu0 0.0
    %1278 = vmatprep.subr.mxu0 0.0
    %1279 = vmatpush1.msra.mxu0 0.0
    %1280 = vmatprep.subr.mxu0 0.0
    %1281 = vmatpush1.msra.mxu0 0.0
    %1282 = vmatprep.subr.mxu0 0.0
    %1283 = vmatpush1.msra.mxu0 0.0
    %1284 = vmatprep.subr.mxu0 0.0
    %1285 = vmatpush1.msra.mxu0 0.0
    %1286 = vmatprep.subr.mxu0 0.0
    %1287 = vmatpush1.msra.mxu0 0.0
    %1288 = vmatprep.subr.mxu0 0.0
    %1289 = vmatpush1.msra.mxu0 0.0
    %1290 = vmatprep.subr.mxu0 0.0
    %1291 = vmatpush1.msra.mxu0 0.0
    %1292 = vmatprep.mubr.f32.mxu0 0.0
    %1293 = vmatmul.mubr.f32.gmra.mrb[0].mxu0 %v1226
    %v1294 = vpop.f32.mrb[0].mxu0
    %v1295 = vadd.f32 0.0, %v1294
    %v1296 = vpop.f32.mrb[0].mxu0
    %1297 = vdwg.mxu0
    %1299 = vrot.lane.b32.xlu0 %v1295, 16
    %v1300 = vpop.permute.xlu0 %1299
    %v1302 = vsel %vm236, %v1128, %v1300
    %s1303 = scalar_lea.vmem %s5, 32
    %v1304 = vld [vmem:[%s1303] sm:$0xff]
    %v1305 = vld [vmem:[%s1303 + $0x8] sm:$0xff]
    %v1306 = vld [vmem:[%s1303 + $0x10] sm:$0xff]
    %v1307 = vld [vmem:[%s1303 + $0x18] sm:$0xff]
    %v1308 = vlaneseq
    %v1309 = vshrl.u32 %v1308, 7
    %v1310 = vsub.s32 1, %v1309
    %v1311 = vrot.slane %v882, %v1310
    %v1313 = vsel %vm126, %v1302, 0
    %1315 = vmatprep.subr.mxu0 0.0
    %1316 = vmatpush1.msra.mxu0 %v1304
    %1317 = vmatprep.subr.mxu0 0.0
    %1318 = vmatpush1.msra.mxu0 %v1305
    %1319 = vmatprep.subr.mxu0 0.0
    %1320 = vmatpush1.msra.mxu0 %v1306
    %1321 = vmatprep.subr.mxu0 0.0
    %1322 = vmatpush1.msra.mxu0 %v1307
    %1323 = vmatprep.subr.mxu0 0.0
    %1324 = vmatpush1.msra.mxu0 0.0
    %1325 = vmatprep.subr.mxu0 0.0
    %1326 = vmatpush1.msra.mxu0 0.0
    %1327 = vmatprep.subr.mxu0 0.0
    %1328 = vmatpush1.msra.mxu0 0.0
    %1329 = vmatprep.subr.mxu0 0.0
    %1330 = vmatpush1.msra.mxu0 0.0
    %1331 = vmatprep.subr.mxu0 0.0
    %1332 = vmatpush1.msra.mxu0 0.0
    %1333 = vmatprep.subr.mxu0 0.0
    %1334 = vmatpush1.msra.mxu0 0.0
    %1335 = vmatprep.subr.mxu0 0.0
    %1336 = vmatpush1.msra.mxu0 0.0
    %1337 = vmatprep.subr.mxu0 0.0
    %1338 = vmatpush1.msra.mxu0 0.0
    %1339 = vmatprep.subr.mxu0 0.0
    %1340 = vmatpush1.msra.mxu0 0.0
    %1341 = vmatprep.subr.mxu0 0.0
    %1342 = vmatpush1.msra.mxu0 0.0
    %1343 = vmatprep.subr.mxu0 0.0
    %1344 = vmatpush1.msra.mxu0 0.0
    %1345 = vmatprep.subr.mxu0 0.0
    %1346 = vmatpush1.msra.mxu0 0.0
    %1347 = vmatprep.subr.mxu0 0.0
    %1348 = vmatpush1.msra.mxu0 0.0
    %1349 = vmatprep.subr.mxu0 0.0
    %1350 = vmatpush1.msra.mxu0 0.0
    %1351 = vmatprep.subr.mxu0 0.0
    %1352 = vmatpush1.msra.mxu0 0.0
    %1353 = vmatprep.subr.mxu0 0.0
    %1354 = vmatpush1.msra.mxu0 0.0
    %1355 = vmatprep.subr.mxu0 0.0
    %1356 = vmatpush1.msra.mxu0 0.0
    %1357 = vmatprep.subr.mxu0 0.0
    %1358 = vmatpush1.msra.mxu0 0.0
    %1359 = vmatprep.subr.mxu0 0.0
    %1360 = vmatpush1.msra.mxu0 0.0
    %1361 = vmatprep.subr.mxu0 0.0
    %1362 = vmatpush1.msra.mxu0 0.0
    %1363 = vmatprep.subr.mxu0 0.0
    %1364 = vmatpush1.msra.mxu0 0.0
    %1365 = vmatprep.subr.mxu0 0.0
    %1366 = vmatpush1.msra.mxu0 0.0
    %1367 = vmatprep.subr.mxu0 0.0
    %1368 = vmatpush1.msra.mxu0 0.0
    %1369 = vmatprep.subr.mxu0 0.0
    %1370 = vmatpush1.msra.mxu0 0.0
    %1371 = vmatprep.subr.mxu0 0.0
    %1372 = vmatpush1.msra.mxu0 0.0
    %1373 = vmatprep.subr.mxu0 0.0
    %1374 = vmatpush1.msra.mxu0 0.0
    %1375 = vmatprep.subr.mxu0 0.0
    %1376 = vmatpush1.msra.mxu0 0.0
    %1377 = vmatprep.subr.mxu0 0.0
    %1378 = vmatpush1.msra.mxu0 0.0
    %1379 = vmatprep.mubr.f32.mxu0 0.0
    %1380 = vmatmul.mubr.f32.gmra.mrb[0].mxu0 %v1313
    %v1381 = vpop.f32.mrb[0].mxu0
    %v1382 = vadd.f32 %v1311, %v1381
    %v1383 = vpop.f32.mrb[0].mxu0
    %1384 = vdwg.mxu0
    %v1385 = vadd.f32 %v880, %v1382
    %v1386 = vsel %vm126, %v1385, 0.0
    %1387 = vadd.xlane.f32.xlu0 %v1386
    %v1388 = vpop.xlane.xlu0 %1387
    %v1389 = vmul.f32 %v1388, %v130
    %v1390 = vsub.f32 %v1385, %v1389
    %v1391 = vmul.f32 %v1390, %v1390
    %v1392 = vsel %vm126, %v1391, 0.0
    %1393 = vadd.xlane.f32.xlu0 %v1392
    %v1394 = vpop.xlane.xlu0 %1393
    %v1395 = vmul.f32 %v1394, %v130
    %v1396 = vadd.f32 %v1395, 1e-12
    %v1397 = vrsqrt.pop %v1396
    %v1398 = vmul.f32 %v1390, %v1397
    %v1399 = vlaneseq
    %v1400 = vshrl.u32 %v1399, 7
    %v1401 = vsub.s32 2, %v1400
    %v1402 = vrot.slane %v882, %v1401
    %v1403 = vmul.f32 %v1398, %v1402
    %v1404 = vlaneseq
    %v1405 = vshrl.u32 %v1404, 7
    %v1406 = vsub.s32 3, %v1405
    %v1407 = vrot.slane %v882, %v1406
    %v1408 = vadd.f32 %v1403, %v1407
    %s1409 = scalar_lea.vmem %s6, 32
    %v1410 = vld [vmem:[%s1409] sm:$0xff]
    %v1411 = vld [vmem:[%s1409 + $0x8] sm:$0xff]
    %v1412 = vld [vmem:[%s1409 + $0x10] sm:$0xff]
    %v1413 = vld [vmem:[%s1409 + $0x18] sm:$0xff]
    %v1414 = vlaneseq
    %v1415 = vshrl.u32 %v1414, 7
    %v1416 = vsub.s32 4, %v1415
    %v1417 = vrot.slane %v882, %v1416
    %v1419 = vsel %vm126, %v1408, 0
    %1421 = vmatprep.subr.mxu0 0.0
    %1422 = vmatpush1.msra.mxu0 %v1410
    %1423 = vmatprep.subr.mxu0 0.0
    %1424 = vmatpush1.msra.mxu0 %v1411
    %1425 = vmatprep.subr.mxu0 0.0
    %1426 = vmatpush1.msra.mxu0 %v1412
    %1427 = vmatprep.subr.mxu0 0.0
    %1428 = vmatpush1.msra.mxu0 %v1413
    %1429 = vmatprep.subr.mxu0 0.0
    %1430 = vmatpush1.msra.mxu0 0.0
    %1431 = vmatprep.subr.mxu0 0.0
    %1432 = vmatpush1.msra.mxu0 0.0
    %1433 = vmatprep.subr.mxu0 0.0
    %1434 = vmatpush1.msra.mxu0 0.0
    %1435 = vmatprep.subr.mxu0 0.0
    %1436 = vmatpush1.msra.mxu0 0.0
    %1437 = vmatprep.subr.mxu0 0.0
    %1438 = vmatpush1.msra.mxu0 0.0
    %1439 = vmatprep.subr.mxu0 0.0
    %1440 = vmatpush1.msra.mxu0 0.0
    %1441 = vmatprep.subr.mxu0 0.0
    %1442 = vmatpush1.msra.mxu0 0.0
    %1443 = vmatprep.subr.mxu0 0.0
    %1444 = vmatpush1.msra.mxu0 0.0
    %1445 = vmatprep.subr.mxu0 0.0
    %1446 = vmatpush1.msra.mxu0 0.0
    %1447 = vmatprep.subr.mxu0 0.0
    %1448 = vmatpush1.msra.mxu0 0.0
    %1449 = vmatprep.subr.mxu0 0.0
    %1450 = vmatpush1.msra.mxu0 0.0
    %1451 = vmatprep.subr.mxu0 0.0
    %1452 = vmatpush1.msra.mxu0 0.0
    %1453 = vmatprep.subr.mxu0 0.0
    %1454 = vmatpush1.msra.mxu0 0.0
    %1455 = vmatprep.subr.mxu0 0.0
    %1456 = vmatpush1.msra.mxu0 0.0
    %1457 = vmatprep.subr.mxu0 0.0
    %1458 = vmatpush1.msra.mxu0 0.0
    %1459 = vmatprep.subr.mxu0 0.0
    %1460 = vmatpush1.msra.mxu0 0.0
    %1461 = vmatprep.subr.mxu0 0.0
    %1462 = vmatpush1.msra.mxu0 0.0
    %1463 = vmatprep.subr.mxu0 0.0
    %1464 = vmatpush1.msra.mxu0 0.0
    %1465 = vmatprep.subr.mxu0 0.0
    %1466 = vmatpush1.msra.mxu0 0.0
    %1467 = vmatprep.subr.mxu0 0.0
    %1468 = vmatpush1.msra.mxu0 0.0
    %1469 = vmatprep.subr.mxu0 0.0
    %1470 = vmatpush1.msra.mxu0 0.0
    %1471 = vmatprep.subr.mxu0 0.0
    %1472 = vmatpush1.msra.mxu0 0.0
    %1473 = vmatprep.subr.mxu0 0.0
    %1474 = vmatpush1.msra.mxu0 0.0
    %1475 = vmatprep.subr.mxu0 0.0
    %1476 = vmatpush1.msra.mxu0 0.0
    %1477 = vmatprep.subr.mxu0 0.0
    %1478 = vmatpush1.msra.mxu0 0.0
    %1479 = vmatprep.subr.mxu0 0.0
    %1480 = vmatpush1.msra.mxu0 0.0
    %1481 = vmatprep.subr.mxu0 0.0
    %1482 = vmatpush1.msra.mxu0 0.0
    %1483 = vmatprep.subr.mxu0 0.0
    %1484 = vmatpush1.msra.mxu0 0.0
    %1485 = vmatprep.mubr.f32.mxu0 0.0
    %1486 = vmatmul.mubr.f32.gmra.mrb[0].mxu0 %v1419
    %v1487 = vpop.f32.mrb[0].mxu0
    %v1488 = vadd.f32 %v1417, %v1487
    %v1489 = vpop.f32.mrb[0].mxu0
    %1490 = vdwg.mxu0
    %v1491 = vmul.f32 %v1488, %v1488
    %v1492 = vmul.f32 %v1488, %v1491
    %v1493 = vmul.f32 %v1492, 0.044715
    %v1494 = vadd.f32 %v1488, %v1493
    %v1495 = vmul.f32 %v1494, 0.7978846
    %v1496 = vtanh.pop %v1495
    %v1497 = vadd.f32 %v1496, 1.0
    %v1498 = vmul.f32 %v1497, 0.5
    %v1499 = vmul.f32 %v1488, %v1498
    %s1500 = scalar_lea.vmem %s7, 64
    %v1501 = vld [vmem:[%s1500] sm:$0xff]
    %v1502 = vld [vmem:[%s1500 + $0x8] sm:$0xff]
    %v1503 = vld [vmem:[%s1500 + $0x10] sm:$0xff]
    %v1504 = vld [vmem:[%s1500 + $0x18] sm:$0xff]
    %v1505 = vld [vmem:[%s1500 + $0x20] sm:$0xff]
    %v1506 = vld [vmem:[%s1500 + $0x28] sm:$0xff]
    %v1507 = vld [vmem:[%s1500 + $0x30] sm:$0xff]
    %v1508 = vld [vmem:[%s1500 + $0x38] sm:$0xff]
    %v1509 = vlaneseq
    %v1510 = vshrl.u32 %v1509, 7
    %v1511 = vsub.s32 5, %v1510
    %v1512 = vrot.slane %v882, %v1511
    %v1514 = vsel %vm52, %v1499, 0
    %1516 = vmatprep.subr.mxu0 0.0
    %1517 = vmatpush1.msra.mxu0 %v1501
    %1518 = vmatprep.subr.mxu0 0.0
    %1519 = vmatpush1.msra.mxu0 %v1502
    %1520 = vmatprep.subr.mxu0 0.0
    %1521 = vmatpush1.msra.mxu0 %v1503
    %1522 = vmatprep.subr.mxu0 0.0
    %1523 = vmatpush1.msra.mxu0 %v1504
    %1524 = vmatprep.subr.mxu0 0.0
    %1525 = vmatpush1.msra.mxu0 %v1505
    %1526 = vmatprep.subr.mxu0 0.0
    %1527 = vmatpush1.msra.mxu0 %v1506
    %1528 = vmatprep.subr.mxu0 0.0
    %1529 = vmatpush1.msra.mxu0 %v1507
    %1530 = vmatprep.subr.mxu0 0.0
    %1531 = vmatpush1.msra.mxu0 %v1508
    %1532 = vmatprep.subr.mxu0 0.0
    %1533 = vmatpush1.msra.mxu0 0.0
    %1534 = vmatprep.subr.mxu0 0.0
    %1535 = vmatpush1.msra.mxu0 0.0
    %1536 = vmatprep.subr.mxu0 0.0
    %1537 = vmatpush1.msra.mxu0 0.0
    %1538 = vmatprep.subr.mxu0 0.0
    %1539 = vmatpush1.msra.mxu0 0.0
    %1540 = vmatprep.subr.mxu0 0.0
    %1541 = vmatpush1.msra.mxu0 0.0
    %1542 = vmatprep.subr.mxu0 0.0
    %1543 = vmatpush1.msra.mxu0 0.0
    %1544 = vmatprep.subr.mxu0 0.0
    %1545 = vmatpush1.msra.mxu0 0.0
    %1546 = vmatprep.subr.mxu0 0.0
    %1547 = vmatpush1.msra.mxu0 0.0
    %1548 = vmatprep.subr.mxu0 0.0
    %1549 = vmatpush1.msra.mxu0 0.0
    %1550 = vmatprep.subr.mxu0 0.0
    %1551 = vmatpush1.msra.mxu0 0.0
    %1552 = vmatprep.subr.mxu0 0.0
    %1553 = vmatpush1.msra.mxu0 0.0
    %1554 = vmatprep.subr.mxu0 0.0
    %1555 = vmatpush1.msra.mxu0 0.0
    %1556 = vmatprep.subr.mxu0 0.0
    %1557 = vmatpush1.msra.mxu0 0.0
    %1558 = vmatprep.subr.mxu0 0.0
    %1559 = vmatpush1.msra.mxu0 0.0
    %1560 = vmatprep.subr.mxu0 0.0
    %1561 = vmatpush1.msra.mxu0 0.0
    %1562 = vmatprep.subr.mxu0 0.0
    %1563 = vmatpush1.msra.mxu0 0.0
    %1564 = vmatprep.subr.mxu0 0.0
    %1565 = vmatpush1.msra.mxu0 0.0
    %1566 = vmatprep.subr.mxu0 0.0
    %1567 = vmatpush1.msra.mxu0 0.0
    %1568 = vmatprep.subr.mxu0 0.0
    %1569 = vmatpush1.msra.mxu0 0.0
    %1570 = vmatprep.subr.mxu0 0.0
    %1571 = vmatpush1.msra.mxu0 0.0
    %1572 = vmatprep.subr.mxu0 0.0
    %1573 = vmatpush1.msra.mxu0 0.0
    %1574 = vmatprep.subr.mxu0 0.0
    %1575 = vmatpush1.msra.mxu0 0.0
    %1576 = vmatprep.subr.mxu0 0.0
    %1577 = vmatpush1.msra.mxu0 0.0
    %1578 = vmatprep.subr.mxu0 0.0
    %1579 = vmatpush1.msra.mxu0 0.0
    %1580 = vmatprep.mubr.f32.mxu0 0.0
    %1581 = vmatmul.mubr.f32.gmra.mrb[0].mxu0 %v1514
    %v1582 = vpop.f32.mrb[0].mxu0
    %v1583 = vadd.f32 %v1512, %v1582
    %v1584 = vpop.f32.mrb[0].mxu0
    %1585 = vdwg.mxu0
    %v1586 = vadd.f32 %v1408, %v1583
    %v1587 = vsel %vm126, %v1586, 0.0
    %1588 = vadd.xlane.f32.xlu0 %v1587
    %v1589 = vpop.xlane.xlu0 %1588
    %v1590 = vmul.f32 %v1589, %v130
    %v1591 = vsub.f32 %v1586, %v1590
    %v1592 = vmul.f32 %v1591, %v1591
    %v1593 = vsel %vm126, %v1592, 0.0
    %1594 = vadd.xlane.f32.xlu0 %v1593
    %v1595 = vpop.xlane.xlu0 %1594
    %v1596 = vmul.f32 %v1595, %v130
    %v1597 = vadd.f32 %v1596, 1e-12
    %v1598 = vrsqrt.pop %v1597
    %v1599 = vmul.f32 %v1591, %v1598
    %v1600 = vlaneseq
    %v1601 = vshrl.u32 %v1600, 7
    %v1602 = vsub.s32 6, %v1601
    %v1603 = vrot.slane %v882, %v1602
    %v1604 = vmul.f32 %v1599, %v1603
    %v1605 = vlaneseq
    %v1606 = vshrl.u32 %v1605, 7
    %v1607 = vsub.s32 7, %v1606
    %v1608 = vrot.slane %v882, %v1607
    %v1609 = vadd.f32 %v1604, %v1608
    %v1610 = vld [vmem:[%s1] sm:$0x7]
    %1611 = vset.pattern.permute.xlu0 0
    %1612 = vperm.xlu0 %1611, %v1610
    %v1613 = vpop.permute.xlu0 %1612
    %vm1614 = vcmp.ge.s32.totalorder %v35, %v1613
    %1615 = vset.pattern.permute.xlu0 1
    %1616 = vperm.xlu0 %1615, %v1610
    %v1617 = vpop.permute.xlu0 %1616
    %vm1618 = vcmp.lt.s32.totalorder %v35, %v1617
    %vm1619 = vmand %vm1614, %vm1618
    %v1620 = vsel %vm1619, 1, 0
    %v1621 = vcvt.s32.f32 %v1620
    %v1623 = vsel %vm317, %v1621, 0
    %1625 = vmatprep.subr.mxu0 0.0
    %1626 = vmatpush1.msra.mxu0 %v1609
    %1627 = vmatprep.subr.mxu0 0.0
    %1628 = vmatpush1.msra.mxu0 0.0
    %1629 = vmatprep.subr.mxu0 0.0
    %1630 = vmatpush1.msra.mxu0 0.0
    %1631 = vmatprep.subr.mxu0 0.0
    %1632 = vmatpush1.msra.mxu0 0.0
    %1633 = vmatprep.subr.mxu0 0.0
    %1634 = vmatpush1.msra.mxu0 0.0
    %1635 = vmatprep.subr.mxu0 0.0
    %1636 = vmatpush1.msra.mxu0 0.0
    %1637 = vmatprep.subr.mxu0 0.0
    %1638 = vmatpush1.msra.mxu0 0.0
    %1639 = vmatprep.subr.mxu0 0.0
    %1640 = vmatpush1.msra.mxu0 0.0
    %1641 = vmatprep.subr.mxu0 0.0
    %1642 = vmatpush1.msra.mxu0 0.0
    %1643 = vmatprep.subr.mxu0 0.0
    %1644 = vmatpush1.msra.mxu0 0.0
    %1645 = vmatprep.subr.mxu0 0.0
    %1646 = vmatpush1.msra.mxu0 0.0
    %1647 = vmatprep.subr.mxu0 0.0
    %1648 = vmatpush1.msra.mxu0 0.0
    %1649 = vmatprep.subr.mxu0 0.0
    %1650 = vmatpush1.msra.mxu0 0.0
    %1651 = vmatprep.subr.mxu0 0.0
    %1652 = vmatpush1.msra.mxu0 0.0
    %1653 = vmatprep.subr.mxu0 0.0
    %1654 = vmatpush1.msra.mxu0 0.0
    %1655 = vmatprep.subr.mxu0 0.0
    %1656 = vmatpush1.msra.mxu0 0.0
    %1657 = vmatprep.subr.mxu0 0.0
    %1658 = vmatpush1.msra.mxu0 0.0
    %1659 = vmatprep.subr.mxu0 0.0
    %1660 = vmatpush1.msra.mxu0 0.0
    %1661 = vmatprep.subr.mxu0 0.0
    %1662 = vmatpush1.msra.mxu0 0.0
    %1663 = vmatprep.subr.mxu0 0.0
    %1664 = vmatpush1.msra.mxu0 0.0
    %1665 = vmatprep.subr.mxu0 0.0
    %1666 = vmatpush1.msra.mxu0 0.0
    %1667 = vmatprep.subr.mxu0 0.0
    %1668 = vmatpush1.msra.mxu0 0.0
    %1669 = vmatprep.subr.mxu0 0.0
    %1670 = vmatpush1.msra.mxu0 0.0
    %1671 = vmatprep.subr.mxu0 0.0
    %1672 = vmatpush1.msra.mxu0 0.0
    %1673 = vmatprep.subr.mxu0 0.0
    %1674 = vmatpush1.msra.mxu0 0.0
    %1675 = vmatprep.subr.mxu0 0.0
    %1676 = vmatpush1.msra.mxu0 0.0
    %1677 = vmatprep.subr.mxu0 0.0
    %1678 = vmatpush1.msra.mxu0 0.0
    %1679 = vmatprep.subr.mxu0 0.0
    %1680 = vmatpush1.msra.mxu0 0.0
    %1681 = vmatprep.subr.mxu0 0.0
    %1682 = vmatpush1.msra.mxu0 0.0
    %1683 = vmatprep.subr.mxu0 0.0
    %1684 = vmatpush1.msra.mxu0 0.0
    %1685 = vmatprep.subr.mxu0 0.0
    %1686 = vmatpush1.msra.mxu0 0.0
    %1687 = vmatprep.subr.mxu0 0.0
    %1688 = vmatpush1.msra.mxu0 0.0
    %1689 = vmatprep.mubr.f32.mxu0 0.0
    %1690 = vmatmul.mubr.f32.gmra.mrb[0].mxu0 %v1623
    %v1691 = vpop.f32.mrb[0].mxu0
    %v1692 = vadd.f32 0.0, %v1691
    %v1693 = vpop.f32.mrb[0].mxu0
    %1694 = vdwg.mxu0
    %1695 = vrot.lane.b32.xlu0 %v1610, 1
    %v1696 = vpop.permute.xlu0 %1695
    %v1697 = vsub.s32 %v1610, %v1696
    %v1698 = vcvt.s32.f32 %v1697
    %1700 = vset.pattern.permute.xlu0 1
    %1701 = vperm.xlu0 %1700, %v1698
    %v1702 = vpop.permute.xlu0 %1701
    %v1704 = vrcp.pop %v1702
    %v1705 = vmul.f32 %v1692, %v1704
    %vm1706 = vcmask 256000
    %1707 = vst.msk [vmem:[#allocation2] sm:$0x7] %vm1706, %v1705
    // Predicated region
    $region38: #{_forward_jit.1} parent=1 // pred_check
      _
    $region39: #{_forward_jit.1} parent=1 // pred_check_branch
      %1709 = sbr.rel (0) target = $region41
    $region40: #{_forward_jit.1} parent=1 // pred_region
      %s1711 = ssub.s32 64, 64
      %1712 = vsyncadd [#allocation3], %s1711
      %s1714 = sshll.u32 [#allocation2], 4
      %s1715 = int_to_ptr.vmem [resolvable:$true] %s1714
      %1717 = dma.vmem_to_hbm [thread:$0]  %s1715, 64, %s9, [#allocation3]
    $region41: #{_forward_jit.1} parent=1 // pred_fallthru
      _
    // Predicated region
    $region42: #{_forward_jit.1} parent=1 // pred_check
      _
    $region43: #{_forward_jit.1} parent=1 // pred_check_branch
      %1719 = sbr.rel (0) target = $region45
    $region44: #{_forward_jit.1} parent=1 // pred_region
      %1720 = dma.done [#allocation3], 64
    $region45: #{_forward_jit.1} parent=1 // pred_fallthru
      _
    %1721 = vsyncpa [#allocation3], 1

</llo_original>
